<compile_context>
chip_gen: v6e
topology: v6e:2x2x1
jax: 0.10.0
libtpu: 0.0.40
codegen_flags: <defaults>
</compile_context>

<pallas_src>
import functools

import jax
import jax.numpy as jnp
from jax import lax
from jax.experimental import pallas as pl
from jax.experimental.pallas import tpu as pltpu


def _relu6(v):
    return jnp.clip(v, 0.0, 6.0)


def _boundary_masks(H, W, L, dilation, dtype):
    """Per-tap 0/1 zero-padding masks, generated in-kernel from a lane iota.

    Lanes are laid out as  lane = b_local*H*W + row*W + col  (bt images
    lane-concatenated), so any roll that crosses an image (or array) edge only
    lands on lanes whose row/col validity check fails -> masked to zero.
    Returns a list of 9 (1, L) arrays; the center tap (index 4) is None.
    """
    d = dilation
    lane = lax.broadcasted_iota(jnp.int32, (1, L), 1)
    if W & (W - 1) == 0:                          # power-of-two fast path
        col = lane & (W - 1)
        rowq = lane >> (W.bit_length() - 1)
    else:
        col = lane % W
        rowq = lane // W
    if L == H * W:
        row = rowq
    elif H & (H - 1) == 0:
        row = rowq & (H - 1)
    else:
        row = rowq % H

    masks = []
    for kh in range(3):
        for kw in range(3):
            dh, dw = (kh - 1) * d, (kw - 1) * d
            ok = None
            if dh < 0:
                ok = row >= -dh
            elif dh > 0:
                ok = row < H - dh
            if dw < 0:
                c_ok = col >= -dw
                ok = c_ok if ok is None else (ok & c_ok)
            elif dw > 0:
                c_ok = col < W - dw
                ok = c_ok if ok is None else (ok & c_ok)
            masks.append(None if ok is None else ok.astype(dtype))
    return masks


def _ddrb_kernel(x_ref, w_in_ref, w_taps_ref, w_pw_ref, o_ref, *,
                 H, W, dilation, channels, compute_dtype):
    """One batch-group (bt lane-concatenated images) per grid step.

    x_ref     : (1, C, L)   L = bt*H*W on the lane axis
    w_in_ref  : (4C, C)     conv0[0] rows duplicated per group slot
                            (rows [0,2C): slot 0, rows [2C,4C): slot 1)
    w_taps_ref: (2C, 32)    per-tap weight columns:
                            col t      -> conv0[2] input-slot 0, tap t
                            col 9 + t  -> conv0[2] input-slot 1, tap t
                            col 18 + t -> conv1[0] tap t (rows [0,C) only)
    w_pw_ref  : (C, 3C)     [:, :2C] = conv0[4],  [:, 2C:] = conv1[2]
    """
    C = channels
    C2 = 2 * C
    d = dilation
    L = x_ref.shape[-1]
    f32 = jnp.float32
    cdt = compute_dtype
    # Default MXU precision (single pass), f32 accumulation — per perf review.
    dot = functools.partial(jnp.dot, preferred_element_type=f32)

    def shifted(src, off):
        # result[:, p] = src[:, p + off]  (image-crossing lanes get masked)
        return pltpu.roll(src, (-off) % L, axis=1)

    x = x_ref[0].astype(f32)                                     # (C, L)
    masks = _boundary_masks(H, W, L, d, cdt)

    # ---- conv0[0]: 1x1 C -> 2C on the MXU, ReLU6.  Rows are pre-duplicated
    # per group slot; both slot matrices ride one (4C, C) @ (C, L) matmul.
    both = _relu6(dot(w_in_ref[...].astype(f32), x))             # (4C, L)
    sel0 = both[:C2].astype(cdt)                                 # t1[2*(oc//2)]
    sel1 = both[C2:].astype(cdt)                                 # t1[2*(oc//2)+1]

    # ---- conv0[2]: 3x3 dilated grouped conv (groups=C, 2 in / 2 out), ReLU6.
    # Center tap initializes the accumulator; other taps fuse the mask:
    #     acc += mask * (w_i0*shift(sel0) + w_i1*shift(sel1))
    w00 = w_taps_ref[:, 4:5].astype(cdt)                         # center, slot 0
    w01 = w_taps_ref[:, 13:14].astype(cdt)                       # center, slot 1
    acc2 = (w00 * sel0 + w01 * sel1).astype(f32)
    for t in range(9):
        if t == 4:
            continue
        kh, kw = t // 3, t % 3
        off = (kh - 1) * d * W + (kw - 1) * d
        w_i0 = w_taps_ref[:, t:t + 1].astype(cdt)                # (2C, 1)
        w_i1 = w_taps_ref[:, 9 + t:10 + t].astype(cdt)           # (2C, 1)
        tap = masks[t] * (w_i0 * shifted(sel0, off) + w_i1 * shifted(sel1, off))
        acc2 = acc2 + tap.astype(f32)
    t2 = _relu6(acc2)                                            # (2C, L)

    # ---- conv0[4]: 1x1 2C -> C on the MXU (no activation).
    w_pw = w_pw_ref[...].astype(f32)                             # (C, 3C)
    t3 = dot(w_pw[:, :C2], t2)                                   # (C, L)

    # ---- conv1[0]: 3x3 dilated depthwise conv (groups=C), ReLU6.
    t3c = t3.astype(cdt)
    wdc = w_taps_ref[:C, 22:23].astype(cdt)                      # center tap (18+4)
    acc4 = (wdc * t3c).astype(f32)
    for t in range(9):
        if t == 4:
            continue
        kh, kw = t // 3, t % 3
        off = (kh - 1) * d * W + (kw - 1) * d
        w_d = w_taps_ref[:C, 18 + t:19 + t].astype(cdt)          # (C, 1)
        tap = masks[t] * (w_d * shifted(t3c, off))
        acc4 = acc4 + tap.astype(f32)
    t4 = _relu6(acc4)                                            # (C, L)

    # ---- conv1[2]: 1x1 C -> C on the MXU, then residual add (re-read x).
    t5 = dot(w_pw[:, C2:], t4)                                   # (C, L)
    o_ref[0] = (t5 + x_ref[0].astype(f32)).astype(o_ref.dtype)


def _pick_batch_tile(B, HW, lane_budget):
    """Largest divisor of B whose lane-concat block stays within lane_budget."""
    bt = 1
    for cand in range(1, B + 1):
        if B % cand == 0 and cand * HW <= max(lane_budget, HW):
            bt = cand
    return bt


def depthwise_dilated_residual_block(x, w0a, wg, w0c, wd, w1b, dilation, *,
                                     batch_tile=None,
                                     compute_dtype=jnp.float32,
                                     lane_budget=2048,
                                     vmem_limit_bytes=48 * 1024 * 1024):
    """x: (B, C, H, W).  Weights in PyTorch OIHW convention (bias=False).

    w0a: (2C, C, 1, 1)   conv0[0]
    wg : (2C, 2, 3, 3)   conv0[2], groups=C
    w0c: (C, 2C, 1, 1)   conv0[4]
    wd : (C, 1, 3, 3)    conv1[0], groups=C
    w1b: (C, C, 1, 1)    conv1[2]

    compute_dtype=jnp.bfloat16 runs the tap FMA chains in bf16 (accumulators
    stay f32) on v6e/v7x; keep the f32 default on v5e (no bf16 VPU).
    """
    B, C, H, W = x.shape
    C2, HW = 2 * C, H * W
    d = dilation

    # Images lane-concatenated per grid step (fills the 128-lane axis at small
    # HW); the in-kernel row/col masks make image-crossing rolls harmless.
    bt = batch_tile if batch_tile is not None else _pick_batch_tile(B, HW, lane_budget)
    assert B % bt == 0
    G = B // bt
    L = bt * HW

    # ---- weight repacking (host/XLA side, tiny) ----
    w0a2 = w0a[:, :, 0, 0].astype(jnp.float32)                   # (2C, C)
    w_in = jnp.concatenate(
        [jnp.repeat(w0a2[0::2], 2, axis=0),                      # row oc -> w0a[2*(oc//2)]
         jnp.repeat(w0a2[1::2], 2, axis=0)], axis=0)             # row oc -> w0a[2*(oc//2)+1]
    w_taps = jnp.zeros((C2, 32), jnp.float32)
    w_taps = w_taps.at[:, 0:18].set(wg.reshape(C2, 18).astype(jnp.float32))
    w_taps = w_taps.at[:C, 18:27].set(wd.reshape(C, 9).astype(jnp.float32))
    w_pw = jnp.concatenate([w0c[:, :, 0, 0], w1b[:, :, 0, 0]],
                           axis=1).astype(jnp.float32)           # (C, 3C)

    if bt == 1:
        x_blk = x.reshape(B, C, HW)
    else:
        x_blk = x.reshape(G, bt, C, HW).transpose(0, 2, 1, 3).reshape(G, C, L)

    kernel = functools.partial(_ddrb_kernel, H=H, W=W, dilation=d,
                               channels=C, compute_dtype=compute_dtype)

    # TODO(synk): add an H row-band grid axis with a 2*dilation halo (band-local
    # masks) so derain-scale images keep all intermediates under VMEM on v7x.
    out_blk = pl.pallas_call(
        kernel,
        out_shape=jax.ShapeDtypeStruct((G, C, L), x.dtype),
        grid_spec=pltpu.PrefetchScalarGridSpec(
            num_scalar_prefetch=0,
            grid=(G,),
            in_specs=[
                pl.BlockSpec((1, C, L), lambda g: (g, 0, 0)),     # activations
                pl.BlockSpec(w_in.shape, lambda g: (0, 0)),       # (4C, C)
                pl.BlockSpec(w_taps.shape, lambda g: (0, 0)),     # (2C, 32)
                pl.BlockSpec(w_pw.shape, lambda g: (0, 0)),       # (C, 3C)
            ],
            out_specs=pl.BlockSpec((1, C, L), lambda g: (g, 0, 0)),
        ),
        compiler_params=pltpu.CompilerParams(
            dimension_semantics=("parallel",),       # batch groups across TCs
            vmem_limit_bytes=vmem_limit_bytes),
    )(x_blk, w_in, w_taps, w_pw)

    if bt == 1:
        return out_blk.reshape(B, C, H, W)
    return out_blk.reshape(G, C, bt, HW).transpose(0, 2, 1, 3).reshape(B, C, H, W)


def _reference(x, w0a, wg, w0c, wd, w1b, dilation, channels):
    """Pure-JAX f32-accurate reference matching the PyTorch forward."""
    def conv(inp, w, dil, pad, groups):
        return lax.conv_general_dilated(
            inp, w, window_strides=(1, 1),
            padding=((pad, pad), (pad, pad)),
            rhs_dilation=(dil, dil),
            dimension_numbers=("NCHW", "OIHW", "NCHW"),
            feature_group_count=groups,
            precision=lax.Precision.HIGHEST)

    t = _relu6(conv(x, w0a, 1, 0, 1))
    t = _relu6(conv(t, wg, dilation, dilation, channels))
    t = conv(t, w0c, 1, 0, 1)
    t = _relu6(conv(t, wd, dilation, dilation, channels))
    t = conv(t, w1b, 1, 0, 1)
    return t + x


if __name__ == "__main__":
    key = jax.random.PRNGKey(0)
    B, C, H, W = 2, 4, 16, 16
    dilation = 2
    C2 = 2 * C
    # reduced_channels appears in the PyTorch __init__ but is unused by forward().

    ks = jax.random.split(key, 6)
    x = jax.random.normal(ks[0], (B, C, H, W), jnp.float32)
    # Deterministic synthetic weights, PyTorch shapes (bias=False everywhere):
    w0a = 0.3 * jax.random.normal(ks[1], (C2, C, 1, 1), jnp.float32)   # conv0[0]
    wg = 0.3 * jax.random.normal(ks[2], (C2, 2, 3, 3), jnp.float32)    # conv0[2], groups=C
    w0c = 0.3 * jax.random.normal(ks[3], (C, C2, 1, 1), jnp.float32)   # conv0[4]
    wd = 0.3 * jax.random.normal(ks[4], (C, 1, 3, 3), jnp.float32)     # conv1[0], groups=C
    w1b = 0.3 * jax.random.normal(ks[5], (C, C, 1, 1), jnp.float32)    # conv1[2]

    out = depthwise_dilated_residual_block(x, w0a, wg, w0c, wd, w1b, dilation)
    out = jax.block_until_ready(out)

    ref = _reference(x, w0a, wg, w0c, wd, w1b, dilation, C)
    assert out.shape == (B, C, H, W)
    # Tolerance covers default (single-pass bf16) MXU rounding of the three 1x1
    # convs vs the f32-accurate reference (Precision.HIGHEST dropped per perf
    # review); the dilated 3x3 tap math itself is exact f32 on the VPU.
    err = float(jnp.max(jnp.abs(out - ref)))
    assert jnp.allclose(out, ref, atol=3e-2, rtol=3e-2), err
    print("KERNEL_OK")
</pallas_src>

<mosaic_0001>
module attributes {stable_mosaic.version = 11 : i64} {
  func.func @_ddrb_kernel(%arg0: i32, %arg1: memref<1x4x512xf32, #tpu.memory_space<vmem>>, %arg2: memref<16x4xf32, #tpu.memory_space<vmem>>, %arg3: memref<8x32xf32, #tpu.memory_space<vmem>>, %arg4: memref<4x12xf32, #tpu.memory_space<vmem>>, %arg5: memref<1x4x512xf32, #tpu.memory_space<vmem>>) attributes {dimension_semantics = [#tpu.dimension_semantics<parallel>], iteration_bounds = array<i64: 1>, scalar_prefetch = 0 : i64, scratch_operands = 0 : i64, tpu.core_type = #tpu.core_type<tc>, window_params = [{transform_indices = @transform_0, window_bounds = array<i64: 1, 4, 512>}, {pipeline_mode = #tpu.pipeline_mode<synchronous>, transform_indices = @transform_1, window_bounds = array<i64: 16, 4>}, {pipeline_mode = #tpu.pipeline_mode<synchronous>, transform_indices = @transform_2, window_bounds = array<i64: 8, 32>}, {pipeline_mode = #tpu.pipeline_mode<synchronous>, transform_indices = @transform_3, window_bounds = array<i64: 4, 12>}, {transform_indices = @transform_4, window_bounds = array<i64: 1, 4, 512>}]} {
    %c0 = arith.constant 0 : index
    %c0_0 = arith.constant 0 : index
    %c0_1 = arith.constant 0 : index
    %0 = vector.load %arg1[%c0, %c0_0, %c0_1] : memref<1x4x512xf32, #tpu.memory_space<vmem>>, vector<1x4x512xf32>
    %1 = vector.shape_cast %0 : vector<1x4x512xf32> to vector<4x512xf32>
    %2 = tpu.iota {dimensions = array<i32: 1>} : vector<1x512xi32>
    %c15_i32 = arith.constant 15 : i32
    %3 = vector.broadcast %c15_i32 : i32 to vector<1x512xi32>
    %4 = arith.andi %2, %3 : vector<1x512xi32>
    %c4_i32 = arith.constant 4 : i32
    %5 = vector.broadcast %c4_i32 : i32 to vector<1x512xi32>
    %6 = arith.shrsi %2, %5 : vector<1x512xi32>
    %c15_i32_2 = arith.constant 15 : i32
    %7 = vector.broadcast %c15_i32_2 : i32 to vector<1x512xi32>
    %8 = arith.andi %6, %7 : vector<1x512xi32>
    %c2_i32 = arith.constant 2 : i32
    %9 = vector.broadcast %c2_i32 : i32 to vector<1x512xi32>
    %10 = arith.cmpi sge, %8, %9 : vector<1x512xi32>
    %c2_i32_3 = arith.constant 2 : i32
    %11 = vector.broadcast %c2_i32_3 : i32 to vector<1x512xi32>
    %12 = arith.cmpi sge, %4, %11 : vector<1x512xi32>
    %13 = arith.andi %10, %12 : vector<1x512xi1>
    %14 = arith.extui %13 : vector<1x512xi1> to vector<1x512xi32>
    %15 = arith.sitofp %14 : vector<1x512xi32> to vector<1x512xf32>
    %c2_i32_4 = arith.constant 2 : i32
    %16 = vector.broadcast %c2_i32_4 : i32 to vector<1x512xi32>
    %17 = arith.cmpi sge, %8, %16 : vector<1x512xi32>
    %18 = arith.extui %17 : vector<1x512xi1> to vector<1x512xi32>
    %19 = arith.sitofp %18 : vector<1x512xi32> to vector<1x512xf32>
    %c2_i32_5 = arith.constant 2 : i32
    %20 = vector.broadcast %c2_i32_5 : i32 to vector<1x512xi32>
    %21 = arith.cmpi sge, %8, %20 : vector<1x512xi32>
    %c14_i32 = arith.constant 14 : i32
    %22 = vector.broadcast %c14_i32 : i32 to vector<1x512xi32>
    %23 = arith.cmpi slt, %4, %22 : vector<1x512xi32>
    %24 = arith.andi %21, %23 : vector<1x512xi1>
    %25 = arith.extui %24 : vector<1x512xi1> to vector<1x512xi32>
    %26 = arith.sitofp %25 : vector<1x512xi32> to vector<1x512xf32>
    %c2_i32_6 = arith.constant 2 : i32
    %27 = vector.broadcast %c2_i32_6 : i32 to vector<1x512xi32>
    %28 = arith.cmpi sge, %4, %27 : vector<1x512xi32>
    %29 = arith.extui %28 : vector<1x512xi1> to vector<1x512xi32>
    %30 = arith.sitofp %29 : vector<1x512xi32> to vector<1x512xf32>
    %c14_i32_7 = arith.constant 14 : i32
    %31 = vector.broadcast %c14_i32_7 : i32 to vector<1x512xi32>
    %32 = arith.cmpi slt, %4, %31 : vector<1x512xi32>
    %33 = arith.extui %32 : vector<1x512xi1> to vector<1x512xi32>
    %34 = arith.sitofp %33 : vector<1x512xi32> to vector<1x512xf32>
    %c14_i32_8 = arith.constant 14 : i32
    %35 = vector.broadcast %c14_i32_8 : i32 to vector<1x512xi32>
    %36 = arith.cmpi slt, %8, %35 : vector<1x512xi32>
    %c2_i32_9 = arith.constant 2 : i32
    %37 = vector.broadcast %c2_i32_9 : i32 to vector<1x512xi32>
    %38 = arith.cmpi sge, %4, %37 : vector<1x512xi32>
    %39 = arith.andi %36, %38 : vector<1x512xi1>
    %40 = arith.extui %39 : vector<1x512xi1> to vector<1x512xi32>
    %41 = arith.sitofp %40 : vector<1x512xi32> to vector<1x512xf32>
    %c14_i32_10 = arith.constant 14 : i32
    %42 = vector.broadcast %c14_i32_10 : i32 to vector<1x512xi32>
    %43 = arith.cmpi slt, %8, %42 : vector<1x512xi32>
    %44 = arith.extui %43 : vector<1x512xi1> to vector<1x512xi32>
    %45 = arith.sitofp %44 : vector<1x512xi32> to vector<1x512xf32>
    %c14_i32_11 = arith.constant 14 : i32
    %46 = vector.broadcast %c14_i32_11 : i32 to vector<1x512xi32>
    %47 = arith.cmpi slt, %8, %46 : vector<1x512xi32>
    %c14_i32_12 = arith.constant 14 : i32
    %48 = vector.broadcast %c14_i32_12 : i32 to vector<1x512xi32>
    %49 = arith.cmpi slt, %4, %48 : vector<1x512xi32>
    %50 = arith.andi %47, %49 : vector<1x512xi1>
    %51 = arith.extui %50 : vector<1x512xi1> to vector<1x512xi32>
    %52 = arith.sitofp %51 : vector<1x512xi32> to vector<1x512xf32>
    %c0_13 = arith.constant 0 : index
    %c0_14 = arith.constant 0 : index
    %53 = vector.load %arg2[%c0_13, %c0_14] : memref<16x4xf32, #tpu.memory_space<vmem>>, vector<16x4xf32>
    %cst = arith.constant dense<0.000000e+00> : vector<16x512xf32>
    %54 = tpu.matmul %53, %1, %cst {dimension_numbers = #tpu.dot_dimension_numbers<[1], [0], [0], [1], [0, 0, 1, 1], [], []>} : vector<16x4xf32>, vector<4x512xf32>, vector<16x512xf32> -> vector<16x512xf32>
    %cst_15 = arith.constant 0.000000e+00 : f32
    %cst_16 = arith.constant 6.000000e+00 : f32
    %55 = vector.broadcast %cst_15 : f32 to vector<16x512xf32>
    %56 = arith.maximumf %55, %54 : vector<16x512xf32>
    %57 = vector.broadcast %cst_16 : f32 to vector<16x512xf32>
    %58 = arith.minimumf %57, %56 : vector<16x512xf32>
    %59 = vector.extract_strided_slice %58 {offsets = [0, 0], sizes = [8, 512], strides = [1, 1]} : vector<16x512xf32> to vector<8x512xf32>
    %60 = vector.extract_strided_slice %58 {offsets = [8, 0], sizes = [8, 512], strides = [1, 1]} : vector<16x512xf32> to vector<8x512xf32>
    %c0_17 = arith.constant 0 : index
    %c4 = arith.constant 4 : index
    %61 = vector.load %arg3[%c0_17, %c4] : memref<8x32xf32, #tpu.memory_space<vmem>>, vector<8x1xf32>
    %c0_18 = arith.constant 0 : index
    %c13 = arith.constant 13 : index
    %62 = vector.load %arg3[%c0_18, %c13] : memref<8x32xf32, #tpu.memory_space<vmem>>, vector<8x1xf32>
    %63 = vector.broadcast %61 : vector<8x1xf32> to vector<8x512xf32>
    %64 = arith.mulf %63, %59 : vector<8x512xf32>
    %65 = vector.broadcast %62 : vector<8x1xf32> to vector<8x512xf32>
    %66 = arith.mulf %65, %60 : vector<8x512xf32>
    %67 = arith.addf %64, %66 : vector<8x512xf32>
    %c0_19 = arith.constant 0 : index
    %c0_20 = arith.constant 0 : index
    %68 = vector.load %arg3[%c0_19, %c0_20] : memref<8x32xf32, #tpu.memory_space<vmem>>, vector<8x1xf32>
    %c0_21 = arith.constant 0 : index
    %c9 = arith.constant 9 : index
    %69 = vector.load %arg3[%c0_21, %c9] : memref<8x32xf32, #tpu.memory_space<vmem>>, vector<8x1xf32>
    %c34_i32 = arith.constant 34 : i32
    %70 = tpu.dynamic_rotate %59 by %c34_i32 dim 1 : vector<8x512xf32>, i32 -> vector<8x512xf32>
    %71 = vector.broadcast %68 : vector<8x1xf32> to vector<8x512xf32>
    %72 = arith.mulf %71, %70 : vector<8x512xf32>
    %c34_i32_22 = arith.constant 34 : i32
    %73 = tpu.dynamic_rotate %60 by %c34_i32_22 dim 1 : vector<8x512xf32>, i32 -> vector<8x512xf32>
    %74 = vector.broadcast %69 : vector<8x1xf32> to vector<8x512xf32>
    %75 = arith.mulf %74, %73 : vector<8x512xf32>
    %76 = arith.addf %72, %75 : vector<8x512xf32>
    %77 = vector.broadcast %15 : vector<1x512xf32> to vector<8x512xf32>
    %78 = arith.mulf %77, %76 : vector<8x512xf32>
    %79 = arith.addf %67, %78 : vector<8x512xf32>
    %c0_23 = arith.constant 0 : index
    %c1 = arith.constant 1 : index
    %80 = vector.load %arg3[%c0_23, %c1] : memref<8x32xf32, #tpu.memory_space<vmem>>, vector<8x1xf32>
    %c0_24 = arith.constant 0 : index
    %c10 = arith.constant 10 : index
    %81 = vector.load %arg3[%c0_24, %c10] : memref<8x32xf32, #tpu.memory_space<vmem>>, vector<8x1xf32>
    %c32_i32 = arith.constant 32 : i32
    %82 = tpu.dynamic_rotate %59 by %c32_i32 dim 1 : vector<8x512xf32>, i32 -> vector<8x512xf32>
    %83 = vector.broadcast %80 : vector<8x1xf32> to vector<8x512xf32>
    %84 = arith.mulf %83, %82 : vector<8x512xf32>
    %c32_i32_25 = arith.constant 32 : i32
    %85 = tpu.dynamic_rotate %60 by %c32_i32_25 dim 1 : vector<8x512xf32>, i32 -> vector<8x512xf32>
    %86 = vector.broadcast %81 : vector<8x1xf32> to vector<8x512xf32>
    %87 = arith.mulf %86, %85 : vector<8x512xf32>
    %88 = arith.addf %84, %87 : vector<8x512xf32>
    %89 = vector.broadcast %19 : vector<1x512xf32> to vector<8x512xf32>
    %90 = arith.mulf %89, %88 : vector<8x512xf32>
    %91 = arith.addf %79, %90 : vector<8x512xf32>
    %c0_26 = arith.constant 0 : index
    %c2 = arith.constant 2 : index
    %92 = vector.load %arg3[%c0_26, %c2] : memref<8x32xf32, #tpu.memory_space<vmem>>, vector<8x1xf32>
    %c0_27 = arith.constant 0 : index
    %c11 = arith.constant 11 : index
    %93 = vector.load %arg3[%c0_27, %c11] : memref<8x32xf32, #tpu.memory_space<vmem>>, vector<8x1xf32>
    %c30_i32 = arith.constant 30 : i32
    %94 = tpu.dynamic_rotate %59 by %c30_i32 dim 1 : vector<8x512xf32>, i32 -> vector<8x512xf32>
    %95 = vector.broadcast %92 : vector<8x1xf32> to vector<8x512xf32>
    %96 = arith.mulf %95, %94 : vector<8x512xf32>
    %c30_i32_28 = arith.constant 30 : i32
    %97 = tpu.dynamic_rotate %60 by %c30_i32_28 dim 1 : vector<8x512xf32>, i32 -> vector<8x512xf32>
    %98 = vector.broadcast %93 : vector<8x1xf32> to vector<8x512xf32>
    %99 = arith.mulf %98, %97 : vector<8x512xf32>
    %100 = arith.addf %96, %99 : vector<8x512xf32>
    %101 = vector.broadcast %26 : vector<1x512xf32> to vector<8x512xf32>
    %102 = arith.mulf %101, %100 : vector<8x512xf32>
    %103 = arith.addf %91, %102 : vector<8x512xf32>
    %c0_29 = arith.constant 0 : index
    %c3 = arith.constant 3 : index
    %104 = vector.load %arg3[%c0_29, %c3] : memref<8x32xf32, #tpu.memory_space<vmem>>, vector<8x1xf32>
    %c0_30 = arith.constant 0 : index
    %c12 = arith.constant 12 : index
    %105 = vector.load %arg3[%c0_30, %c12] : memref<8x32xf32, #tpu.memory_space<vmem>>, vector<8x1xf32>
    %c2_i32_31 = arith.constant 2 : i32
    %106 = tpu.dynamic_rotate %59 by %c2_i32_31 dim 1 : vector<8x512xf32>, i32 -> vector<8x512xf32>
    %107 = vector.broadcast %104 : vector<8x1xf32> to vector<8x512xf32>
    %108 = arith.mulf %107, %106 : vector<8x512xf32>
    %c2_i32_32 = arith.constant 2 : i32
    %109 = tpu.dynamic_rotate %60 by %c2_i32_32 dim 1 : vector<8x512xf32>, i32 -> vector<8x512xf32>
    %110 = vector.broadcast %105 : vector<8x1xf32> to vector<8x512xf32>
    %111 = arith.mulf %110, %109 : vector<8x512xf32>
    %112 = arith.addf %108, %111 : vector<8x512xf32>
    %113 = vector.broadcast %30 : vector<1x512xf32> to vector<8x512xf32>
    %114 = arith.mulf %113, %112 : vector<8x512xf32>
    %115 = arith.addf %103, %114 : vector<8x512xf32>
    %c0_33 = arith.constant 0 : index
    %c5 = arith.constant 5 : index
    %116 = vector.load %arg3[%c0_33, %c5] : memref<8x32xf32, #tpu.memory_space<vmem>>, vector<8x1xf32>
    %c0_34 = arith.constant 0 : index
    %c14 = arith.constant 14 : index
    %117 = vector.load %arg3[%c0_34, %c14] : memref<8x32xf32, #tpu.memory_space<vmem>>, vector<8x1xf32>
    %c510_i32 = arith.constant 510 : i32
    %118 = tpu.dynamic_rotate %59 by %c510_i32 dim 1 : vector<8x512xf32>, i32 -> vector<8x512xf32>
    %119 = vector.broadcast %116 : vector<8x1xf32> to vector<8x512xf32>
    %120 = arith.mulf %119, %118 : vector<8x512xf32>
    %c510_i32_35 = arith.constant 510 : i32
    %121 = tpu.dynamic_rotate %60 by %c510_i32_35 dim 1 : vector<8x512xf32>, i32 -> vector<8x512xf32>
    %122 = vector.broadcast %117 : vector<8x1xf32> to vector<8x512xf32>
    %123 = arith.mulf %122, %121 : vector<8x512xf32>
    %124 = arith.addf %120, %123 : vector<8x512xf32>
    %125 = vector.broadcast %34 : vector<1x512xf32> to vector<8x512xf32>
    %126 = arith.mulf %125, %124 : vector<8x512xf32>
    %127 = arith.addf %115, %126 : vector<8x512xf32>
    %c0_36 = arith.constant 0 : index
    %c6 = arith.constant 6 : index
    %128 = vector.load %arg3[%c0_36, %c6] : memref<8x32xf32, #tpu.memory_space<vmem>>, vector<8x1xf32>
    %c0_37 = arith.constant 0 : index
    %c15 = arith.constant 15 : index
    %129 = vector.load %arg3[%c0_37, %c15] : memref<8x32xf32, #tpu.memory_space<vmem>>, vector<8x1xf32>
    %c482_i32 = arith.constant 482 : i32
    %130 = tpu.dynamic_rotate %59 by %c482_i32 dim 1 : vector<8x512xf32>, i32 -> vector<8x512xf32>
    %131 = vector.broadcast %128 : vector<8x1xf32> to vector<8x512xf32>
    %132 = arith.mulf %131, %130 : vector<8x512xf32>
    %c482_i32_38 = arith.constant 482 : i32
    %133 = tpu.dynamic_rotate %60 by %c482_i32_38 dim 1 : vector<8x512xf32>, i32 -> vector<8x512xf32>
    %134 = vector.broadcast %129 : vector<8x1xf32> to vector<8x512xf32>
    %135 = arith.mulf %134, %133 : vector<8x512xf32>
    %136 = arith.addf %132, %135 : vector<8x512xf32>
    %137 = vector.broadcast %41 : vector<1x512xf32> to vector<8x512xf32>
    %138 = arith.mulf %137, %136 : vector<8x512xf32>
    %139 = arith.addf %127, %138 : vector<8x512xf32>
    %c0_39 = arith.constant 0 : index
    %c7 = arith.constant 7 : index
    %140 = vector.load %arg3[%c0_39, %c7] : memref<8x32xf32, #tpu.memory_space<vmem>>, vector<8x1xf32>
    %c0_40 = arith.constant 0 : index
    %c16 = arith.constant 16 : index
    %141 = vector.load %arg3[%c0_40, %c16] : memref<8x32xf32, #tpu.memory_space<vmem>>, vector<8x1xf32>
    %c480_i32 = arith.constant 480 : i32
    %142 = tpu.dynamic_rotate %59 by %c480_i32 dim 1 : vector<8x512xf32>, i32 -> vector<8x512xf32>
    %143 = vector.broadcast %140 : vector<8x1xf32> to vector<8x512xf32>
    %144 = arith.mulf %143, %142 : vector<8x512xf32>
    %c480_i32_41 = arith.constant 480 : i32
    %145 = tpu.dynamic_rotate %60 by %c480_i32_41 dim 1 : vector<8x512xf32>, i32 -> vector<8x512xf32>
    %146 = vector.broadcast %141 : vector<8x1xf32> to vector<8x512xf32>
    %147 = arith.mulf %146, %145 : vector<8x512xf32>
    %148 = arith.addf %144, %147 : vector<8x512xf32>
    %149 = vector.broadcast %45 : vector<1x512xf32> to vector<8x512xf32>
    %150 = arith.mulf %149, %148 : vector<8x512xf32>
    %151 = arith.addf %139, %150 : vector<8x512xf32>
    %c0_42 = arith.constant 0 : index
    %c8 = arith.constant 8 : index
    %152 = vector.load %arg3[%c0_42, %c8] : memref<8x32xf32, #tpu.memory_space<vmem>>, vector<8x1xf32>
    %c0_43 = arith.constant 0 : index
    %c17 = arith.constant 17 : index
    %153 = vector.load %arg3[%c0_43, %c17] : memref<8x32xf32, #tpu.memory_space<vmem>>, vector<8x1xf32>
    %c478_i32 = arith.constant 478 : i32
    %154 = tpu.dynamic_rotate %59 by %c478_i32 dim 1 : vector<8x512xf32>, i32 -> vector<8x512xf32>
    %155 = vector.broadcast %152 : vector<8x1xf32> to vector<8x512xf32>
    %156 = arith.mulf %155, %154 : vector<8x512xf32>
    %c478_i32_44 = arith.constant 478 : i32
    %157 = tpu.dynamic_rotate %60 by %c478_i32_44 dim 1 : vector<8x512xf32>, i32 -> vector<8x512xf32>
    %158 = vector.broadcast %153 : vector<8x1xf32> to vector<8x512xf32>
    %159 = arith.mulf %158, %157 : vector<8x512xf32>
    %160 = arith.addf %156, %159 : vector<8x512xf32>
    %161 = vector.broadcast %52 : vector<1x512xf32> to vector<8x512xf32>
    %162 = arith.mulf %161, %160 : vector<8x512xf32>
    %163 = arith.addf %151, %162 : vector<8x512xf32>
    %cst_45 = arith.constant 0.000000e+00 : f32
    %cst_46 = arith.constant 6.000000e+00 : f32
    %164 = vector.broadcast %cst_45 : f32 to vector<8x512xf32>
    %165 = arith.maximumf %164, %163 : vector<8x512xf32>
    %166 = vector.broadcast %cst_46 : f32 to vector<8x512xf32>
    %167 = arith.minimumf %166, %165 : vector<8x512xf32>
    %c0_47 = arith.constant 0 : index
    %c0_48 = arith.constant 0 : index
    %168 = vector.load %arg4[%c0_47, %c0_48] : memref<4x12xf32, #tpu.memory_space<vmem>>, vector<4x12xf32>
    %169 = vector.extract_strided_slice %168 {offsets = [0, 0], sizes = [4, 8], strides = [1, 1]} : vector<4x12xf32> to vector<4x8xf32>
    %cst_49 = arith.constant dense<0.000000e+00> : vector<4x512xf32>
    %170 = tpu.matmul %169, %167, %cst_49 {dimension_numbers = #tpu.dot_dimension_numbers<[1], [0], [0], [1], [0, 0, 1, 1], [], []>} : vector<4x8xf32>, vector<8x512xf32>, vector<4x512xf32> -> vector<4x512xf32>
    %c0_50 = arith.constant 0 : index
    %c22 = arith.constant 22 : index
    %171 = vector.load %arg3[%c0_50, %c22] : memref<8x32xf32, #tpu.memory_space<vmem>>, vector<4x1xf32>
    %172 = vector.broadcast %171 : vector<4x1xf32> to vector<4x512xf32>
    %173 = arith.mulf %172, %170 : vector<4x512xf32>
    %c0_51 = arith.constant 0 : index
    %c18 = arith.constant 18 : index
    %174 = vector.load %arg3[%c0_51, %c18] : memref<8x32xf32, #tpu.memory_space<vmem>>, vector<4x1xf32>
    %c34_i32_52 = arith.constant 34 : i32
    %175 = tpu.dynamic_rotate %170 by %c34_i32_52 dim 1 : vector<4x512xf32>, i32 -> vector<4x512xf32>
    %176 = vector.broadcast %174 : vector<4x1xf32> to vector<4x512xf32>
    %177 = arith.mulf %176, %175 : vector<4x512xf32>
    %178 = vector.broadcast %15 : vector<1x512xf32> to vector<4x512xf32>
    %179 = arith.mulf %178, %177 : vector<4x512xf32>
    %180 = arith.addf %173, %179 : vector<4x512xf32>
    %c0_53 = arith.constant 0 : index
    %c19 = arith.constant 19 : index
    %181 = vector.load %arg3[%c0_53, %c19] : memref<8x32xf32, #tpu.memory_space<vmem>>, vector<4x1xf32>
    %c32_i32_54 = arith.constant 32 : i32
    %182 = tpu.dynamic_rotate %170 by %c32_i32_54 dim 1 : vector<4x512xf32>, i32 -> vector<4x512xf32>
    %183 = vector.broadcast %181 : vector<4x1xf32> to vector<4x512xf32>
    %184 = arith.mulf %183, %182 : vector<4x512xf32>
    %185 = vector.broadcast %19 : vector<1x512xf32> to vector<4x512xf32>
    %186 = arith.mulf %185, %184 : vector<4x512xf32>
    %187 = arith.addf %180, %186 : vector<4x512xf32>
    %c0_55 = arith.constant 0 : index
    %c20 = arith.constant 20 : index
    %188 = vector.load %arg3[%c0_55, %c20] : memref<8x32xf32, #tpu.memory_space<vmem>>, vector<4x1xf32>
    %c30_i32_56 = arith.constant 30 : i32
    %189 = tpu.dynamic_rotate %170 by %c30_i32_56 dim 1 : vector<4x512xf32>, i32 -> vector<4x512xf32>
    %190 = vector.broadcast %188 : vector<4x1xf32> to vector<4x512xf32>
    %191 = arith.mulf %190, %189 : vector<4x512xf32>
    %192 = vector.broadcast %26 : vector<1x512xf32> to vector<4x512xf32>
    %193 = arith.mulf %192, %191 : vector<4x512xf32>
    %194 = arith.addf %187, %193 : vector<4x512xf32>
    %c0_57 = arith.constant 0 : index
    %c21 = arith.constant 21 : index
    %195 = vector.load %arg3[%c0_57, %c21] : memref<8x32xf32, #tpu.memory_space<vmem>>, vector<4x1xf32>
    %c2_i32_58 = arith.constant 2 : i32
    %196 = tpu.dynamic_rotate %170 by %c2_i32_58 dim 1 : vector<4x512xf32>, i32 -> vector<4x512xf32>
    %197 = vector.broadcast %195 : vector<4x1xf32> to vector<4x512xf32>
    %198 = arith.mulf %197, %196 : vector<4x512xf32>
    %199 = vector.broadcast %30 : vector<1x512xf32> to vector<4x512xf32>
    %200 = arith.mulf %199, %198 : vector<4x512xf32>
    %201 = arith.addf %194, %200 : vector<4x512xf32>
    %c0_59 = arith.constant 0 : index
    %c23 = arith.constant 23 : index
    %202 = vector.load %arg3[%c0_59, %c23] : memref<8x32xf32, #tpu.memory_space<vmem>>, vector<4x1xf32>
    %c510_i32_60 = arith.constant 510 : i32
    %203 = tpu.dynamic_rotate %170 by %c510_i32_60 dim 1 : vector<4x512xf32>, i32 -> vector<4x512xf32>
    %204 = vector.broadcast %202 : vector<4x1xf32> to vector<4x512xf32>
    %205 = arith.mulf %204, %203 : vector<4x512xf32>
    %206 = vector.broadcast %34 : vector<1x512xf32> to vector<4x512xf32>
    %207 = arith.mulf %206, %205 : vector<4x512xf32>
    %208 = arith.addf %201, %207 : vector<4x512xf32>
    %c0_61 = arith.constant 0 : index
    %c24 = arith.constant 24 : index
    %209 = vector.load %arg3[%c0_61, %c24] : memref<8x32xf32, #tpu.memory_space<vmem>>, vector<4x1xf32>
    %c482_i32_62 = arith.constant 482 : i32
    %210 = tpu.dynamic_rotate %170 by %c482_i32_62 dim 1 : vector<4x512xf32>, i32 -> vector<4x512xf32>
    %211 = vector.broadcast %209 : vector<4x1xf32> to vector<4x512xf32>
    %212 = arith.mulf %211, %210 : vector<4x512xf32>
    %213 = vector.broadcast %41 : vector<1x512xf32> to vector<4x512xf32>
    %214 = arith.mulf %213, %212 : vector<4x512xf32>
    %215 = arith.addf %208, %214 : vector<4x512xf32>
    %c0_63 = arith.constant 0 : index
    %c25 = arith.constant 25 : index
    %216 = vector.load %arg3[%c0_63, %c25] : memref<8x32xf32, #tpu.memory_space<vmem>>, vector<4x1xf32>
    %c480_i32_64 = arith.constant 480 : i32
    %217 = tpu.dynamic_rotate %170 by %c480_i32_64 dim 1 : vector<4x512xf32>, i32 -> vector<4x512xf32>
    %218 = vector.broadcast %216 : vector<4x1xf32> to vector<4x512xf32>
    %219 = arith.mulf %218, %217 : vector<4x512xf32>
    %220 = vector.broadcast %45 : vector<1x512xf32> to vector<4x512xf32>
    %221 = arith.mulf %220, %219 : vector<4x512xf32>
    %222 = arith.addf %215, %221 : vector<4x512xf32>
    %c0_65 = arith.constant 0 : index
    %c26 = arith.constant 26 : index
    %223 = vector.load %arg3[%c0_65, %c26] : memref<8x32xf32, #tpu.memory_space<vmem>>, vector<4x1xf32>
    %c478_i32_66 = arith.constant 478 : i32
    %224 = tpu.dynamic_rotate %170 by %c478_i32_66 dim 1 : vector<4x512xf32>, i32 -> vector<4x512xf32>
    %225 = vector.broadcast %223 : vector<4x1xf32> to vector<4x512xf32>
    %226 = arith.mulf %225, %224 : vector<4x512xf32>
    %227 = vector.broadcast %52 : vector<1x512xf32> to vector<4x512xf32>
    %228 = arith.mulf %227, %226 : vector<4x512xf32>
    %229 = arith.addf %222, %228 : vector<4x512xf32>
    %cst_67 = arith.constant 0.000000e+00 : f32
    %cst_68 = arith.constant 6.000000e+00 : f32
    %230 = vector.broadcast %cst_67 : f32 to vector<4x512xf32>
    %231 = arith.maximumf %230, %229 : vector<4x512xf32>
    %232 = vector.broadcast %cst_68 : f32 to vector<4x512xf32>
    %233 = arith.minimumf %232, %231 : vector<4x512xf32>
    %234 = vector.extract_strided_slice %168 {offsets = [0, 8], sizes = [4, 4], strides = [1, 1]} : vector<4x12xf32> to vector<4x4xf32>
    %cst_69 = arith.constant dense<0.000000e+00> : vector<4x512xf32>
    %235 = tpu.matmul %234, %233, %cst_69 {dimension_numbers = #tpu.dot_dimension_numbers<[1], [0], [0], [1], [0, 0, 1, 1], [], []>} : vector<4x4xf32>, vector<4x512xf32>, vector<4x512xf32> -> vector<4x512xf32>
    %c0_70 = arith.constant 0 : index
    %c0_71 = arith.constant 0 : index
    %c0_72 = arith.constant 0 : index
    %236 = vector.load %arg1[%c0_70, %c0_71, %c0_72] : memref<1x4x512xf32, #tpu.memory_space<vmem>>, vector<1x4x512xf32>
    %237 = vector.shape_cast %236 : vector<1x4x512xf32> to vector<4x512xf32>
    %238 = arith.addf %235, %237 : vector<4x512xf32>
    %c0_73 = arith.constant 0 : index
    %c0_74 = arith.constant 0 : index
    %c0_75 = arith.constant 0 : index
    %239 = vector.load %arg5[%c0_73, %c0_74, %c0_75] : memref<1x4x512xf32, #tpu.memory_space<vmem>>, vector<1x4x512xf32>
    %240 = vector.shape_cast %239 : vector<1x4x512xf32> to vector<4x512xf32>
    %241 = vector.shape_cast %238 : vector<4x512xf32> to vector<1x4x512xf32>
    tpu.vector_store %arg5[%c0_73, %c0_74, %c0_75], %241 {strides = array<i32>} : memref<1x4x512xf32, #tpu.memory_space<vmem>>, vector<1x4x512xf32>,
    return
  }
  func.func @transform_0(%arg0: i32) -> (i32, i32, i32) {
    %c0_i32 = arith.constant 0 : i32
    %c0_i32_0 = arith.constant 0 : i32
    %c0_i32_1 = arith.constant 0 : i32
    return %arg0, %c0_i32, %c0_i32_0 : i32, i32, i32
  }
  func.func @transform_1(%arg0: i32) -> (i32, i32) {
    %c0_i32 = arith.constant 0 : i32
    %c0_i32_0 = arith.constant 0 : i32
    %c0_i32_1 = arith.constant 0 : i32
    return %c0_i32, %c0_i32_0 : i32, i32
  }
  func.func @transform_2(%arg0: i32) -> (i32, i32) {
    %c0_i32 = arith.constant 0 : i32
    %c0_i32_0 = arith.constant 0 : i32
    %c0_i32_1 = arith.constant 0 : i32
    return %c0_i32, %c0_i32_0 : i32, i32
  }
  func.func @transform_3(%arg0: i32) -> (i32, i32) {
    %c0_i32 = arith.constant 0 : i32
    %c0_i32_0 = arith.constant 0 : i32
    %c0_i32_1 = arith.constant 0 : i32
    return %c0_i32, %c0_i32_0 : i32, i32
  }
  func.func @transform_4(%arg0: i32) -> (i32, i32, i32) {
    %c0_i32 = arith.constant 0 : i32
    %c0_i32_0 = arith.constant 0 : i32
    %c0_i32_1 = arith.constant 0 : i32
    return %arg0, %c0_i32, %c0_i32_0 : i32, i32, i32
  }
}

</mosaic_0001>

<llo_original>
// kernel: tpu_custom_call.1
$region0: #{tpu_custom_call.1}
  #allocation0 [shape = 'u32[]', space=smem, size = 0x4, offset = 0x4, fixed_abs, tag = 'smem constant byte address 0x4 - core index']
  #allocation1 [shape = 'u32[144,128]{1,0:T(1,128)}', space=vmem, size = 0x12000, scoped, tag = 'internal scratch']
  %s0 = inlined_call_operand.vmem [shape: f32[1,4,512], index: 0, kind: input, shape index: {}]
  %s1 = inlined_call_operand.vmem [shape: f32[16,4], index: 1, kind: input, shape index: {}]
  %s2 = inlined_call_operand.hbm [shape: f32[8,32], index: 2, kind: input, shape index: {}]
  %s3 = inlined_call_operand.vmem [shape: f32[4,12], index: 3, kind: input, shape index: {}]
  %s4 = inlined_call_operand.hbm [shape: f32[1,4,512], index: 4, kind: output, shape index: {}]
  %s5 = sld [smem:[#allocation0]]
  $region30: #{tpu_custom_call.1} parent=0
    _
  %s7 = ssub.s32 1, %s5
  %s8 = scalar_select 0, %s7, %s5
  $region1: #{tpu_custom_call.1} parent=0
    #allocation2 [shape = 'u8[4096]{0}', space=vmem, size = 0x1000, scoped, tag = 'input window, operand 2, single buffered']
    #allocation3 [shape = 's32[1]{0}', space=sflag, size = 0x4, scoped, tag = 'scoped memory for tpu_custom_call.1']
    #allocation4 [shape = 's32[1]{0}', space=sflag, size = 0x4, scoped, tag = 'scoped memory for tpu_custom_call.1']
    #allocation5 [shape = 'u8[8192]{0}', space=vmem, size = 0x2000, scoped, tag = 'output window, operand 0, single buffered']
    %9 = vsyncpa [#allocation3], 0
    %10 = vsyncpa [#allocation4], 0
    // Predicated region
    $region2: #{tpu_custom_call.1} parent=1 // pred_check
      _
    $region3: #{tpu_custom_call.1} parent=1 // pred_check_branch
      %12 = sbr.rel (0) target = $region5
    $region4: #{tpu_custom_call.1} parent=1 // pred_region
      _
    $region5: #{tpu_custom_call.1} parent=1 // pred_fallthru
      _
    // Predicated region
    $region6: #{tpu_custom_call.1} parent=1 // pred_check
      _
    $region7: #{tpu_custom_call.1} parent=1 // pred_check_branch
      %14 = sbr.rel (0) target = $region9
    $region8: #{tpu_custom_call.1} parent=1 // pred_region
      _
    $region9: #{tpu_custom_call.1} parent=1 // pred_fallthru
      _
    // Predicated region
    $region10: #{tpu_custom_call.1} parent=1 // pred_check
      _
    $region11: #{tpu_custom_call.1} parent=1 // pred_check_branch
      %16 = sbr.rel (0) target = $region13
    $region12: #{tpu_custom_call.1} parent=1 // pred_region
      %s18 = ssub.s32 128, 128
      %19 = vsyncadd [#allocation3], %s18
      %s21 = sshll.u32 [#allocation2], 4
      %s22 = int_to_ptr.vmem [resolvable:$true] %s21
      %24 = dma.hbm_to_vmem [thread:$0]  %s2, 128, %s22, [#allocation3]
    $region13: #{tpu_custom_call.1} parent=1 // pred_fallthru
      _
    // Predicated region
    $region14: #{tpu_custom_call.1} parent=1 // pred_check
      _
    $region15: #{tpu_custom_call.1} parent=1 // pred_check_branch
      %26 = sbr.rel (0) target = $region17
    $region16: #{tpu_custom_call.1} parent=1 // pred_region
      _
    $region17: #{tpu_custom_call.1} parent=1 // pred_fallthru
      _
    // Predicated region
    $region18: #{tpu_custom_call.1} parent=1 // pred_check
      _
    $region19: #{tpu_custom_call.1} parent=1 // pred_check_branch
      %28 = sbr.rel (0) target = $region21
    $region20: #{tpu_custom_call.1} parent=1 // pred_region
      %29 = dma.done [#allocation3], 128
    $region21: #{tpu_custom_call.1} parent=1 // pred_fallthru
      _
    %v30 = vld [vmem:[%s0] sm:$0xff]
    %v31 = vld [vmem:[%s0 + $0x8] sm:$0xff]
    %v32 = vlaneseq
    %v33 = vand.u32 %v32, 127
    %v34 = vadd.s32 %v33, 128
    %v35 = vadd.s32 %v33, 256
    %v36 = vadd.s32 %v33, 384
    %v37 = vand.u32 %v33, 15
    %v38 = vand.u32 %v34, 15
    %v39 = vand.u32 %v35, 15
    %v40 = vand.u32 %v36, 15
    %v41 = vshra.s32 %v33, 4
    %v42 = vshra.s32 %v34, 4
    %v43 = vshra.s32 %v35, 4
    %v44 = vshra.s32 %v36, 4
    %v45 = vand.u32 %v41, 15
    %v46 = vand.u32 %v42, 15
    %v47 = vand.u32 %v43, 15
    %v48 = vand.u32 %v44, 15
    %vm49 = vcmp.ge.s32.totalorder %v45, 2
    %vm50 = vcmp.ge.s32.totalorder %v46, 2
    %vm51 = vcmp.ge.s32.totalorder %v47, 2
    %vm52 = vcmp.ge.s32.totalorder %v48, 2
    %vm53 = vcmp.ge.s32.totalorder %v37, 2
    %vm54 = vcmp.ge.s32.totalorder %v38, 2
    %vm55 = vcmp.ge.s32.totalorder %v39, 2
    %vm56 = vcmp.ge.s32.totalorder %v40, 2
    %vm57 = vmand %vm49, %vm53
    %vm58 = vmand %vm50, %vm54
    %vm59 = vmand %vm51, %vm55
    %vm60 = vmand %vm52, %vm56
    %v61 = vsel %vm57, 1, 0
    %v62 = vsel %vm58, 1, 0
    %v63 = vsel %vm59, 1, 0
    %v64 = vsel %vm60, 1, 0
    %v65 = vcvt.s32.f32 %v61
    %v66 = vcvt.s32.f32 %v62
    %v67 = vcvt.s32.f32 %v63
    %v68 = vcvt.s32.f32 %v64
    %v69 = vsel %vm49, 1, 0
    %v70 = vsel %vm50, 1, 0
    %v71 = vsel %vm51, 1, 0
    %v72 = vsel %vm52, 1, 0
    %v73 = vcvt.s32.f32 %v69
    %v74 = vcvt.s32.f32 %v70
    %v75 = vcvt.s32.f32 %v71
    %v76 = vcvt.s32.f32 %v72
    %vm77 = vcmp.lt.s32.totalorder %v37, 14
    %vm78 = vcmp.lt.s32.totalorder %v38, 14
    %vm79 = vcmp.lt.s32.totalorder %v39, 14
    %vm80 = vcmp.lt.s32.totalorder %v40, 14
    %vm81 = vmand %vm49, %vm77
    %vm82 = vmand %vm50, %vm78
    %vm83 = vmand %vm51, %vm79
    %vm84 = vmand %vm52, %vm80
    %v85 = vsel %vm81, 1, 0
    %v86 = vsel %vm82, 1, 0
    %v87 = vsel %vm83, 1, 0
    %v88 = vsel %vm84, 1, 0
    %v89 = vcvt.s32.f32 %v85
    %v90 = vcvt.s32.f32 %v86
    %v91 = vcvt.s32.f32 %v87
    %v92 = vcvt.s32.f32 %v88
    %v93 = vsel %vm53, 1, 0
    %v94 = vsel %vm54, 1, 0
    %v95 = vsel %vm55, 1, 0
    %v96 = vsel %vm56, 1, 0
    %v97 = vcvt.s32.f32 %v93
    %v98 = vcvt.s32.f32 %v94
    %v99 = vcvt.s32.f32 %v95
    %v100 = vcvt.s32.f32 %v96
    %v101 = vsel %vm77, 1, 0
    %v102 = vsel %vm78, 1, 0
    %v103 = vsel %vm79, 1, 0
    %v104 = vsel %vm80, 1, 0
    %v105 = vcvt.s32.f32 %v101
    %v106 = vcvt.s32.f32 %v102
    %v107 = vcvt.s32.f32 %v103
    %v108 = vcvt.s32.f32 %v104
    %vm109 = vcmp.lt.s32.totalorder %v45, 14
    %vm110 = vcmp.lt.s32.totalorder %v46, 14
    %vm111 = vcmp.lt.s32.totalorder %v47, 14
    %vm112 = vcmp.lt.s32.totalorder %v48, 14
    %vm113 = vmand %vm109, %vm53
    %vm114 = vmand %vm110, %vm54
    %vm115 = vmand %vm111, %vm55
    %vm116 = vmand %vm112, %vm56
    %v117 = vsel %vm113, 1, 0
    %v118 = vsel %vm114, 1, 0
    %v119 = vsel %vm115, 1, 0
    %v120 = vsel %vm116, 1, 0
    %v121 = vcvt.s32.f32 %v117
    %v122 = vcvt.s32.f32 %v118
    %v123 = vcvt.s32.f32 %v119
    %v124 = vcvt.s32.f32 %v120
    %v125 = vsel %vm109, 1, 0
    %v126 = vsel %vm110, 1, 0
    %v127 = vsel %vm111, 1, 0
    %v128 = vsel %vm112, 1, 0
    %v129 = vcvt.s32.f32 %v125
    %v130 = vcvt.s32.f32 %v126
    %v131 = vcvt.s32.f32 %v127
    %v132 = vcvt.s32.f32 %v128
    %vm133 = vmand %vm109, %vm77
    %vm134 = vmand %vm110, %vm78
    %vm135 = vmand %vm111, %vm79
    %vm136 = vmand %vm112, %vm80
    %v137 = vsel %vm133, 1, 0
    %v138 = vsel %vm134, 1, 0
    %v139 = vsel %vm135, 1, 0
    %v140 = vsel %vm136, 1, 0
    %v141 = vcvt.s32.f32 %v137
    %v142 = vcvt.s32.f32 %v138
    %v143 = vcvt.s32.f32 %v139
    %v144 = vcvt.s32.f32 %v140
    %v145 = vld [vmem:[%s1] sm:$0xff]
    %v146 = vld [vmem:[%s1 + $0x8] sm:$0xff]
    %v149 = vcombine.high %v30, %v30
    %v150 = vcombine.high %v31, %v31
    %vm151 = vcmask 31744
    %v153 = vsel %vm151, %v145, 0
    %v156 = vsel %vm151, %v146, 0
    %vm158 = vcmask 1043456
    %v159 = vsel %vm158, %v30, 0
    %v161 = vsel %vm158, %v149, 0
    %v163 = vsel %vm158, %v31, 0
    %v165 = vsel %vm158, %v150, 0
    %167 = vmatprep.subr.mxu0 0.0
    %168 = vmatpush1.msra.mxu0 0.0
    %169 = vmatprep.subr.mxu0 0.0
    %170 = vmatpush1.msra.mxu0 0.0
    %171 = vmatprep.subr.mxu0 0.0
    %172 = vmatpush1.msra.mxu0 0.0
    %173 = vmatprep.subr.mxu0 0.0
    %174 = vmatpush1.msra.mxu0 0.0
    %175 = vmatprep.subr.mxu0 0.0
    %176 = vmatpush1.msra.mxu0 0.0
    %177 = vmatprep.subr.mxu0 0.0
    %178 = vmatpush1.msra.mxu0 0.0
    %179 = vmatprep.subr.mxu0 0.0
    %180 = vmatpush1.msra.mxu0 0.0
    %181 = vmatprep.subr.mxu0 0.0
    %182 = vmatpush1.msra.mxu0 0.0
    %183 = vmatprep.subr.mxu0 0.0
    %184 = vmatpush1.msra.mxu0 0.0
    %185 = vmatprep.subr.mxu0 0.0
    %186 = vmatpush1.msra.mxu0 0.0
    %187 = vmatprep.subr.mxu0 0.0
    %188 = vmatpush1.msra.mxu0 0.0
    %189 = vmatprep.subr.mxu0 0.0
    %190 = vmatpush1.msra.mxu0 0.0
    %191 = vmatprep.subr.mxu0 0.0
    %192 = vmatpush1.msra.mxu0 0.0
    %193 = vmatprep.subr.mxu0 0.0
    %194 = vmatpush1.msra.mxu0 0.0
    %195 = vmatprep.subr.mxu0 0.0
    %196 = vmatpush1.msra.mxu0 0.0
    %197 = vmatprep.subr.mxu0 %v161
    %198 = vmatpush1.msra.mxu0 %v159
    %199 = vmatprep.subr.mxu0 0.0
    %200 = vmatpush2.msra.mxu0 0.0
    %201 = vmatprep.subr.mxu0 0.0
    %202 = vmatpush2.msra.mxu0 0.0
    %203 = vmatprep.subr.mxu0 0.0
    %204 = vmatpush2.msra.mxu0 0.0
    %205 = vmatprep.subr.mxu0 0.0
    %206 = vmatpush2.msra.mxu0 0.0
    %207 = vmatprep.subr.mxu0 0.0
    %208 = vmatpush2.msra.mxu0 0.0
    %209 = vmatprep.subr.mxu0 0.0
    %210 = vmatpush2.msra.mxu0 0.0
    %211 = vmatprep.subr.mxu0 0.0
    %212 = vmatpush2.msra.mxu0 0.0
    %213 = vmatprep.subr.mxu0 0.0
    %214 = vmatpush2.msra.mxu0 0.0
    %215 = vmatprep.subr.mxu0 0.0
    %216 = vmatpush2.msra.mxu0 0.0
    %217 = vmatprep.subr.mxu0 0.0
    %218 = vmatpush2.msra.mxu0 0.0
    %219 = vmatprep.subr.mxu0 0.0
    %220 = vmatpush2.msra.mxu0 0.0
    %221 = vmatprep.subr.mxu0 0.0
    %222 = vmatpush2.msra.mxu0 0.0
    %223 = vmatprep.subr.mxu0 0.0
    %224 = vmatpush2.msra.mxu0 0.0
    %225 = vmatprep.subr.mxu0 0.0
    %226 = vmatpush2.msra.mxu0 0.0
    %227 = vmatprep.subr.mxu0 0.0
    %228 = vmatpush2.msra.mxu0 0.0
    %229 = vmatprep.subr.mxu0 0.0
    %230 = vmatpush2.msra.mxu0 0.0
    %231 = vmatprep.mubr.f32.mxu0 0.0
    %232 = vmatmul.mubr.f32.gmra.mxu0 %v153
    %v233 = vpop.f32.mrf.mxu0
    %v234 = vadd.f32 0.0, %v233
    %v235 = vpop.f32.mrf.mxu0
    %v236 = vadd.f32 0.0, %v235
    %237 = vmatprep.mubr.f32.mxu0 0.0
    %238 = vmatmul.mubr.f32.gmra.mxu0 %v156
    %v239 = vpop.f32.mrf.mxu0
    %v240 = vadd.f32 0.0, %v239
    %v241 = vpop.f32.mrf.mxu0
    %v242 = vadd.f32 0.0, %v241
    %243 = vdwg.mxu0
    %244 = vmatprep.subr.mxu0 0.0
    %245 = vmatpush1.msra.mxu0 0.0
    %246 = vmatprep.subr.mxu0 0.0
    %247 = vmatpush1.msra.mxu0 0.0
    %248 = vmatprep.subr.mxu0 0.0
    %249 = vmatpush1.msra.mxu0 0.0
    %250 = vmatprep.subr.mxu0 0.0
    %251 = vmatpush1.msra.mxu0 0.0
    %252 = vmatprep.subr.mxu0 0.0
    %253 = vmatpush1.msra.mxu0 0.0
    %254 = vmatprep.subr.mxu0 0.0
    %255 = vmatpush1.msra.mxu0 0.0
    %256 = vmatprep.subr.mxu0 0.0
    %257 = vmatpush1.msra.mxu0 0.0
    %258 = vmatprep.subr.mxu0 0.0
    %259 = vmatpush1.msra.mxu0 0.0
    %260 = vmatprep.subr.mxu0 0.0
    %261 = vmatpush1.msra.mxu0 0.0
    %262 = vmatprep.subr.mxu0 0.0
    %263 = vmatpush1.msra.mxu0 0.0
    %264 = vmatprep.subr.mxu0 0.0
    %265 = vmatpush1.msra.mxu0 0.0
    %266 = vmatprep.subr.mxu0 0.0
    %267 = vmatpush1.msra.mxu0 0.0
    %268 = vmatprep.subr.mxu0 0.0
    %269 = vmatpush1.msra.mxu0 0.0
    %270 = vmatprep.subr.mxu0 0.0
    %271 = vmatpush1.msra.mxu0 0.0
    %272 = vmatprep.subr.mxu0 0.0
    %273 = vmatpush1.msra.mxu0 0.0
    %274 = vmatprep.subr.mxu0 %v165
    %275 = vmatpush1.msra.mxu0 %v163
    %276 = vmatprep.subr.mxu0 0.0
    %277 = vmatpush2.msra.mxu0 0.0
    %278 = vmatprep.subr.mxu0 0.0
    %279 = vmatpush2.msra.mxu0 0.0
    %280 = vmatprep.subr.mxu0 0.0
    %281 = vmatpush2.msra.mxu0 0.0
    %282 = vmatprep.subr.mxu0 0.0
    %283 = vmatpush2.msra.mxu0 0.0
    %284 = vmatprep.subr.mxu0 0.0
    %285 = vmatpush2.msra.mxu0 0.0
    %286 = vmatprep.subr.mxu0 0.0
    %287 = vmatpush2.msra.mxu0 0.0
    %288 = vmatprep.subr.mxu0 0.0
    %289 = vmatpush2.msra.mxu0 0.0
    %290 = vmatprep.subr.mxu0 0.0
    %291 = vmatpush2.msra.mxu0 0.0
    %292 = vmatprep.subr.mxu0 0.0
    %293 = vmatpush2.msra.mxu0 0.0
    %294 = vmatprep.subr.mxu0 0.0
    %295 = vmatpush2.msra.mxu0 0.0
    %296 = vmatprep.subr.mxu0 0.0
    %297 = vmatpush2.msra.mxu0 0.0
    %298 = vmatprep.subr.mxu0 0.0
    %299 = vmatpush2.msra.mxu0 0.0
    %300 = vmatprep.subr.mxu0 0.0
    %301 = vmatpush2.msra.mxu0 0.0
    %302 = vmatprep.subr.mxu0 0.0
    %303 = vmatpush2.msra.mxu0 0.0
    %304 = vmatprep.subr.mxu0 0.0
    %305 = vmatpush2.msra.mxu0 0.0
    %306 = vmatprep.subr.mxu0 0.0
    %307 = vmatpush2.msra.mxu0 0.0
    %308 = vmatprep.mubr.f32.mxu0 0.0
    %309 = vmatmul.mubr.f32.gmra.mxu0 %v153
    %v310 = vpop.f32.mrf.mxu0
    %v311 = vadd.f32 0.0, %v310
    %v312 = vpop.f32.mrf.mxu0
    %v313 = vadd.f32 0.0, %v312
    %314 = vmatprep.mubr.f32.mxu0 0.0
    %315 = vmatmul.mubr.f32.gmra.mxu0 %v156
    %v316 = vpop.f32.mrf.mxu0
    %v317 = vadd.f32 0.0, %v316
    %v318 = vpop.f32.mrf.mxu0
    %v319 = vadd.f32 0.0, %v318
    %320 = vdwg.mxu0
    %v321 = vmax.f32 %v234, 0.0
    %v322 = vmax.f32 %v236, 0.0
    %v323 = vmax.f32 %v311, 0.0
    %v324 = vmax.f32 %v313, 0.0
    %v325 = vmax.f32 %v240, 0.0
    %v326 = vmax.f32 %v242, 0.0
    %v327 = vmax.f32 %v317, 0.0
    %v328 = vmax.f32 %v319, 0.0
    %v329 = vmin.f32 %v321, 6.0
    %v330 = vmin.f32 %v322, 6.0
    %v331 = vmin.f32 %v323, 6.0
    %v332 = vmin.f32 %v324, 6.0
    %v333 = vmin.f32 %v325, 6.0
    %v334 = vmin.f32 %v326, 6.0
    %v335 = vmin.f32 %v327, 6.0
    %v336 = vmin.f32 %v328, 6.0
    %v337 = vld [vmem:[#allocation2] sm:$0xff]
    %339 = vset.pattern.permute.xlu0 4
    %340 = vperm.xlu0 %339, %v337
    %v341 = vpop.permute.xlu0 %340
    %v343 = vmul.f32 %v341, %v329
    %v344 = vmul.f32 %v341, %v330
    %v345 = vmul.f32 %v341, %v331
    %v346 = vmul.f32 %v341, %v332
    %347 = vset.pattern.permute.xlu0 13
    %348 = vperm.xlu0 %347, %v337
    %v349 = vpop.permute.xlu0 %348
    %v351 = vmul.f32 %v349, %v333
    %v352 = vmul.f32 %v349, %v334
    %v353 = vmul.f32 %v349, %v335
    %v354 = vmul.f32 %v349, %v336
    %v355 = vadd.f32 %v343, %v351
    %v356 = vadd.f32 %v344, %v352
    %v357 = vadd.f32 %v345, %v353
    %v358 = vadd.f32 %v346, %v354
    %359 = vrot.lane.b32.xlu0 %v329, 34
    %v360 = vpop.permute.xlu0 %359
    %361 = vrot.lane.b32.xlu0 %v330, 34
    %v362 = vpop.permute.xlu0 %361
    %363 = vrot.lane.b32.xlu0 %v331, 34
    %v364 = vpop.permute.xlu0 %363
    %365 = vrot.lane.b32.xlu0 %v332, 34
    %v366 = vpop.permute.xlu0 %365
    %vm367 = vcmp.lt.s32.totalorder %v33, 34
    %v368 = vsel %vm367, %v364, %v366
    %v369 = vsel %vm367, %v362, %v364
    %v370 = vsel %vm367, %v360, %v362
    %v371 = vsel %vm367, %v366, %v360
    %372 = vset.pattern.permute.xlu0 0
    %373 = vperm.xlu0 %372, %v337
    %v374 = vpop.permute.xlu0 %373
    %v376 = vmul.f32 %v374, %v371
    %v377 = vmul.f32 %v374, %v370
    %v378 = vmul.f32 %v374, %v369
    %v379 = vmul.f32 %v374, %v368
    %380 = vrot.lane.b32.xlu0 %v333, 34
    %v381 = vpop.permute.xlu0 %380
    %382 = vrot.lane.b32.xlu0 %v334, 34
    %v383 = vpop.permute.xlu0 %382
    %384 = vrot.lane.b32.xlu0 %v335, 34
    %v385 = vpop.permute.xlu0 %384
    %386 = vrot.lane.b32.xlu0 %v336, 34
    %v387 = vpop.permute.xlu0 %386
    %v388 = vsel %vm367, %v385, %v387
    %v389 = vsel %vm367, %v383, %v385
    %v390 = vsel %vm367, %v381, %v383
    %v391 = vsel %vm367, %v387, %v381
    %392 = vset.pattern.permute.xlu0 9
    %393 = vperm.xlu0 %392, %v337
    %v394 = vpop.permute.xlu0 %393
    %v396 = vmul.f32 %v394, %v391
    %v397 = vmul.f32 %v394, %v390
    %v398 = vmul.f32 %v394, %v389
    %v399 = vmul.f32 %v394, %v388
    %v400 = vadd.f32 %v376, %v396
    %v401 = vadd.f32 %v377, %v397
    %v402 = vadd.f32 %v378, %v398
    %v403 = vadd.f32 %v379, %v399
    %v404 = vmul.f32 %v65, %v400
    %v405 = vmul.f32 %v66, %v401
    %v406 = vmul.f32 %v67, %v402
    %v407 = vmul.f32 %v68, %v403
    %v408 = vadd.f32 %v355, %v404
    %v409 = vadd.f32 %v356, %v405
    %v410 = vadd.f32 %v357, %v406
    %v411 = vadd.f32 %v358, %v407
    %412 = vrot.lane.b32.xlu0 %v329, 32
    %v413 = vpop.permute.xlu0 %412
    %414 = vrot.lane.b32.xlu0 %v330, 32
    %v415 = vpop.permute.xlu0 %414
    %416 = vrot.lane.b32.xlu0 %v331, 32
    %v417 = vpop.permute.xlu0 %416
    %418 = vrot.lane.b32.xlu0 %v332, 32
    %v419 = vpop.permute.xlu0 %418
    %vm420 = vcmp.lt.s32.totalorder %v33, 32
    %v421 = vsel %vm420, %v417, %v419
    %v422 = vsel %vm420, %v415, %v417
    %v423 = vsel %vm420, %v413, %v415
    %v424 = vsel %vm420, %v419, %v413
    %425 = vset.pattern.permute.xlu0 1
    %426 = vperm.xlu0 %425, %v337
    %v427 = vpop.permute.xlu0 %426
    %v429 = vmul.f32 %v427, %v424
    %v430 = vmul.f32 %v427, %v423
    %v431 = vmul.f32 %v427, %v422
    %v432 = vmul.f32 %v427, %v421
    %433 = vrot.lane.b32.xlu0 %v333, 32
    %v434 = vpop.permute.xlu0 %433
    %435 = vrot.lane.b32.xlu0 %v334, 32
    %v436 = vpop.permute.xlu0 %435
    %437 = vrot.lane.b32.xlu0 %v335, 32
    %v438 = vpop.permute.xlu0 %437
    %439 = vrot.lane.b32.xlu0 %v336, 32
    %v440 = vpop.permute.xlu0 %439
    %v441 = vsel %vm420, %v438, %v440
    %v442 = vsel %vm420, %v436, %v438
    %v443 = vsel %vm420, %v434, %v436
    %v444 = vsel %vm420, %v440, %v434
    %445 = vset.pattern.permute.xlu0 10
    %446 = vperm.xlu0 %445, %v337
    %v447 = vpop.permute.xlu0 %446
    %v449 = vmul.f32 %v447, %v444
    %v450 = vmul.f32 %v447, %v443
    %v451 = vmul.f32 %v447, %v442
    %v452 = vmul.f32 %v447, %v441
    %v453 = vadd.f32 %v429, %v449
    %v454 = vadd.f32 %v430, %v450
    %v455 = vadd.f32 %v431, %v451
    %v456 = vadd.f32 %v432, %v452
    %v457 = vmul.f32 %v73, %v453
    %v458 = vmul.f32 %v74, %v454
    %v459 = vmul.f32 %v75, %v455
    %v460 = vmul.f32 %v76, %v456
    %v461 = vadd.f32 %v408, %v457
    %v462 = vadd.f32 %v409, %v458
    %v463 = vadd.f32 %v410, %v459
    %v464 = vadd.f32 %v411, %v460
    %465 = vrot.lane.b32.xlu0 %v329, 30
    %v466 = vpop.permute.xlu0 %465
    %467 = vrot.lane.b32.xlu0 %v330, 30
    %v468 = vpop.permute.xlu0 %467
    %469 = vrot.lane.b32.xlu0 %v331, 30
    %v470 = vpop.permute.xlu0 %469
    %471 = vrot.lane.b32.xlu0 %v332, 30
    %v472 = vpop.permute.xlu0 %471
    %vm473 = vcmp.lt.s32.totalorder %v33, 30
    %v474 = vsel %vm473, %v470, %v472
    %v475 = vsel %vm473, %v468, %v470
    %v476 = vsel %vm473, %v466, %v468
    %v477 = vsel %vm473, %v472, %v466
    %478 = vset.pattern.permute.xlu0 2
    %479 = vperm.xlu0 %478, %v337
    %v480 = vpop.permute.xlu0 %479
    %v482 = vmul.f32 %v480, %v477
    %v483 = vmul.f32 %v480, %v476
    %v484 = vmul.f32 %v480, %v475
    %v485 = vmul.f32 %v480, %v474
    %486 = vrot.lane.b32.xlu0 %v333, 30
    %v487 = vpop.permute.xlu0 %486
    %488 = vrot.lane.b32.xlu0 %v334, 30
    %v489 = vpop.permute.xlu0 %488
    %490 = vrot.lane.b32.xlu0 %v335, 30
    %v491 = vpop.permute.xlu0 %490
    %492 = vrot.lane.b32.xlu0 %v336, 30
    %v493 = vpop.permute.xlu0 %492
    %v494 = vsel %vm473, %v491, %v493
    %v495 = vsel %vm473, %v489, %v491
    %v496 = vsel %vm473, %v487, %v489
    %v497 = vsel %vm473, %v493, %v487
    %498 = vset.pattern.permute.xlu0 11
    %499 = vperm.xlu0 %498, %v337
    %v500 = vpop.permute.xlu0 %499
    %v502 = vmul.f32 %v500, %v497
    %v503 = vmul.f32 %v500, %v496
    %v504 = vmul.f32 %v500, %v495
    %v505 = vmul.f32 %v500, %v494
    %v506 = vadd.f32 %v482, %v502
    %v507 = vadd.f32 %v483, %v503
    %v508 = vadd.f32 %v484, %v504
    %v509 = vadd.f32 %v485, %v505
    %v510 = vmul.f32 %v89, %v506
    %v511 = vmul.f32 %v90, %v507
    %v512 = vmul.f32 %v91, %v508
    %v513 = vmul.f32 %v92, %v509
    %v514 = vadd.f32 %v461, %v510
    %v515 = vadd.f32 %v462, %v511
    %v516 = vadd.f32 %v463, %v512
    %v517 = vadd.f32 %v464, %v513
    %518 = vrot.lane.b32.xlu0 %v329, 2
    %v519 = vpop.permute.xlu0 %518
    %520 = vrot.lane.b32.xlu0 %v330, 2
    %v521 = vpop.permute.xlu0 %520
    %522 = vrot.lane.b32.xlu0 %v331, 2
    %v523 = vpop.permute.xlu0 %522
    %524 = vrot.lane.b32.xlu0 %v332, 2
    %v525 = vpop.permute.xlu0 %524
    %vm526 = vcmp.lt.s32.totalorder %v33, 2
    %v527 = vsel %vm526, %v523, %v525
    %v528 = vsel %vm526, %v521, %v523
    %v529 = vsel %vm526, %v519, %v521
    %v530 = vsel %vm526, %v525, %v519
    %531 = vset.pattern.permute.xlu0 3
    %532 = vperm.xlu0 %531, %v337
    %v533 = vpop.permute.xlu0 %532
    %v535 = vmul.f32 %v533, %v530
    %v536 = vmul.f32 %v533, %v529
    %v537 = vmul.f32 %v533, %v528
    %v538 = vmul.f32 %v533, %v527
    %539 = vrot.lane.b32.xlu0 %v333, 2
    %v540 = vpop.permute.xlu0 %539
    %541 = vrot.lane.b32.xlu0 %v334, 2
    %v542 = vpop.permute.xlu0 %541
    %543 = vrot.lane.b32.xlu0 %v335, 2
    %v544 = vpop.permute.xlu0 %543
    %545 = vrot.lane.b32.xlu0 %v336, 2
    %v546 = vpop.permute.xlu0 %545
    %v547 = vsel %vm526, %v544, %v546
    %v548 = vsel %vm526, %v542, %v544
    %v549 = vsel %vm526, %v540, %v542
    %v550 = vsel %vm526, %v546, %v540
    %551 = vset.pattern.permute.xlu0 12
    %552 = vperm.xlu0 %551, %v337
    %v553 = vpop.permute.xlu0 %552
    %v555 = vmul.f32 %v553, %v550
    %v556 = vmul.f32 %v553, %v549
    %v557 = vmul.f32 %v553, %v548
    %v558 = vmul.f32 %v553, %v547
    %v559 = vadd.f32 %v535, %v555
    %v560 = vadd.f32 %v536, %v556
    %v561 = vadd.f32 %v537, %v557
    %v562 = vadd.f32 %v538, %v558
    %v563 = vmul.f32 %v97, %v559
    %v564 = vmul.f32 %v98, %v560
    %v565 = vmul.f32 %v99, %v561
    %v566 = vmul.f32 %v100, %v562
    %v567 = vadd.f32 %v514, %v563
    %v568 = vadd.f32 %v515, %v564
    %v569 = vadd.f32 %v516, %v565
    %v570 = vadd.f32 %v517, %v566
    %571 = vrot.lane.b32.xlu0 %v329, 126
    %v572 = vpop.permute.xlu0 %571
    %573 = vrot.lane.b32.xlu0 %v330, 126
    %v574 = vpop.permute.xlu0 %573
    %575 = vrot.lane.b32.xlu0 %v331, 126
    %v576 = vpop.permute.xlu0 %575
    %577 = vrot.lane.b32.xlu0 %v332, 126
    %v578 = vpop.permute.xlu0 %577
    %vm579 = vcmp.lt.s32.totalorder %v33, 126
    %v580 = vsel %vm579, %v576, %v578
    %v581 = vsel %vm579, %v574, %v576
    %v582 = vsel %vm579, %v572, %v574
    %v583 = vsel %vm579, %v578, %v572
    %584 = vset.pattern.permute.xlu0 5
    %585 = vperm.xlu0 %584, %v337
    %v586 = vpop.permute.xlu0 %585
    %v588 = vmul.f32 %v586, %v582
    %v589 = vmul.f32 %v586, %v581
    %v590 = vmul.f32 %v586, %v580
    %v591 = vmul.f32 %v586, %v583
    %592 = vrot.lane.b32.xlu0 %v333, 126
    %v593 = vpop.permute.xlu0 %592
    %594 = vrot.lane.b32.xlu0 %v334, 126
    %v595 = vpop.permute.xlu0 %594
    %596 = vrot.lane.b32.xlu0 %v335, 126
    %v597 = vpop.permute.xlu0 %596
    %598 = vrot.lane.b32.xlu0 %v336, 126
    %v599 = vpop.permute.xlu0 %598
    %v600 = vsel %vm579, %v597, %v599
    %v601 = vsel %vm579, %v595, %v597
    %v602 = vsel %vm579, %v593, %v595
    %v603 = vsel %vm579, %v599, %v593
    %604 = vset.pattern.permute.xlu0 14
    %605 = vperm.xlu0 %604, %v337
    %v606 = vpop.permute.xlu0 %605
    %v608 = vmul.f32 %v606, %v602
    %v609 = vmul.f32 %v606, %v601
    %v610 = vmul.f32 %v606, %v600
    %v611 = vmul.f32 %v606, %v603
    %v612 = vadd.f32 %v588, %v608
    %v613 = vadd.f32 %v589, %v609
    %v614 = vadd.f32 %v590, %v610
    %v615 = vadd.f32 %v591, %v611
    %v616 = vmul.f32 %v105, %v612
    %v617 = vmul.f32 %v106, %v613
    %v618 = vmul.f32 %v107, %v614
    %v619 = vmul.f32 %v108, %v615
    %v620 = vadd.f32 %v567, %v616
    %v621 = vadd.f32 %v568, %v617
    %v622 = vadd.f32 %v569, %v618
    %v623 = vadd.f32 %v570, %v619
    %624 = vrot.lane.b32.xlu0 %v329, 98
    %v625 = vpop.permute.xlu0 %624
    %626 = vrot.lane.b32.xlu0 %v330, 98
    %v627 = vpop.permute.xlu0 %626
    %628 = vrot.lane.b32.xlu0 %v331, 98
    %v629 = vpop.permute.xlu0 %628
    %630 = vrot.lane.b32.xlu0 %v332, 98
    %v631 = vpop.permute.xlu0 %630
    %vm632 = vcmp.lt.s32.totalorder %v33, 98
    %v633 = vsel %vm632, %v629, %v631
    %v634 = vsel %vm632, %v627, %v629
    %v635 = vsel %vm632, %v625, %v627
    %v636 = vsel %vm632, %v631, %v625
    %637 = vset.pattern.permute.xlu0 6
    %638 = vperm.xlu0 %637, %v337
    %v639 = vpop.permute.xlu0 %638
    %v641 = vmul.f32 %v639, %v635
    %v642 = vmul.f32 %v639, %v634
    %v643 = vmul.f32 %v639, %v633
    %v644 = vmul.f32 %v639, %v636
    %645 = vrot.lane.b32.xlu0 %v333, 98
    %v646 = vpop.permute.xlu0 %645
    %647 = vrot.lane.b32.xlu0 %v334, 98
    %v648 = vpop.permute.xlu0 %647
    %649 = vrot.lane.b32.xlu0 %v335, 98
    %v650 = vpop.permute.xlu0 %649
    %651 = vrot.lane.b32.xlu0 %v336, 98
    %v652 = vpop.permute.xlu0 %651
    %v653 = vsel %vm632, %v650, %v652
    %v654 = vsel %vm632, %v648, %v650
    %v655 = vsel %vm632, %v646, %v648
    %v656 = vsel %vm632, %v652, %v646
    %657 = vset.pattern.permute.xlu0 15
    %658 = vperm.xlu0 %657, %v337
    %v659 = vpop.permute.xlu0 %658
    %v661 = vmul.f32 %v659, %v655
    %v662 = vmul.f32 %v659, %v654
    %v663 = vmul.f32 %v659, %v653
    %v664 = vmul.f32 %v659, %v656
    %v665 = vadd.f32 %v641, %v661
    %v666 = vadd.f32 %v642, %v662
    %v667 = vadd.f32 %v643, %v663
    %v668 = vadd.f32 %v644, %v664
    %v669 = vmul.f32 %v121, %v665
    %v670 = vmul.f32 %v122, %v666
    %v671 = vmul.f32 %v123, %v667
    %v672 = vmul.f32 %v124, %v668
    %v673 = vadd.f32 %v620, %v669
    %v674 = vadd.f32 %v621, %v670
    %v675 = vadd.f32 %v622, %v671
    %v676 = vadd.f32 %v623, %v672
    %677 = vrot.lane.b32.xlu0 %v329, 96
    %v678 = vpop.permute.xlu0 %677
    %679 = vrot.lane.b32.xlu0 %v330, 96
    %v680 = vpop.permute.xlu0 %679
    %681 = vrot.lane.b32.xlu0 %v331, 96
    %v682 = vpop.permute.xlu0 %681
    %683 = vrot.lane.b32.xlu0 %v332, 96
    %v684 = vpop.permute.xlu0 %683
    %vm685 = vcmp.lt.s32.totalorder %v33, 96
    %v686 = vsel %vm685, %v682, %v684
    %v687 = vsel %vm685, %v680, %v682
    %v688 = vsel %vm685, %v678, %v680
    %v689 = vsel %vm685, %v684, %v678
    %690 = vset.pattern.permute.xlu0 7
    %691 = vperm.xlu0 %690, %v337
    %v692 = vpop.permute.xlu0 %691
    %v694 = vmul.f32 %v692, %v688
    %v695 = vmul.f32 %v692, %v687
    %v696 = vmul.f32 %v692, %v686
    %v697 = vmul.f32 %v692, %v689
    %698 = vrot.lane.b32.xlu0 %v333, 96
    %v699 = vpop.permute.xlu0 %698
    %700 = vrot.lane.b32.xlu0 %v334, 96
    %v701 = vpop.permute.xlu0 %700
    %702 = vrot.lane.b32.xlu0 %v335, 96
    %v703 = vpop.permute.xlu0 %702
    %704 = vrot.lane.b32.xlu0 %v336, 96
    %v705 = vpop.permute.xlu0 %704
    %v706 = vsel %vm685, %v703, %v705
    %v707 = vsel %vm685, %v701, %v703
    %v708 = vsel %vm685, %v699, %v701
    %v709 = vsel %vm685, %v705, %v699
    %710 = vset.pattern.permute.xlu0 16
    %711 = vperm.xlu0 %710, %v337
    %v712 = vpop.permute.xlu0 %711
    %v714 = vmul.f32 %v712, %v708
    %v715 = vmul.f32 %v712, %v707
    %v716 = vmul.f32 %v712, %v706
    %v717 = vmul.f32 %v712, %v709
    %v718 = vadd.f32 %v694, %v714
    %v719 = vadd.f32 %v695, %v715
    %v720 = vadd.f32 %v696, %v716
    %v721 = vadd.f32 %v697, %v717
    %v722 = vmul.f32 %v129, %v718
    %v723 = vmul.f32 %v130, %v719
    %v724 = vmul.f32 %v131, %v720
    %v725 = vmul.f32 %v132, %v721
    %v726 = vadd.f32 %v673, %v722
    %v727 = vadd.f32 %v674, %v723
    %v728 = vadd.f32 %v675, %v724
    %v729 = vadd.f32 %v676, %v725
    %730 = vrot.lane.b32.xlu0 %v329, 94
    %v731 = vpop.permute.xlu0 %730
    %732 = vrot.lane.b32.xlu0 %v330, 94
    %v733 = vpop.permute.xlu0 %732
    %734 = vrot.lane.b32.xlu0 %v331, 94
    %v735 = vpop.permute.xlu0 %734
    %736 = vrot.lane.b32.xlu0 %v332, 94
    %v737 = vpop.permute.xlu0 %736
    %vm738 = vcmp.lt.s32.totalorder %v33, 94
    %v739 = vsel %vm738, %v735, %v737
    %v740 = vsel %vm738, %v733, %v735
    %v741 = vsel %vm738, %v731, %v733
    %v742 = vsel %vm738, %v737, %v731
    %743 = vset.pattern.permute.xlu0 8
    %744 = vperm.xlu0 %743, %v337
    %v745 = vpop.permute.xlu0 %744
    %v747 = vmul.f32 %v745, %v741
    %v748 = vmul.f32 %v745, %v740
    %v749 = vmul.f32 %v745, %v739
    %v750 = vmul.f32 %v745, %v742
    %751 = vrot.lane.b32.xlu0 %v333, 94
    %v752 = vpop.permute.xlu0 %751
    %753 = vrot.lane.b32.xlu0 %v334, 94
    %v754 = vpop.permute.xlu0 %753
    %755 = vrot.lane.b32.xlu0 %v335, 94
    %v756 = vpop.permute.xlu0 %755
    %757 = vrot.lane.b32.xlu0 %v336, 94
    %v758 = vpop.permute.xlu0 %757
    %v759 = vsel %vm738, %v756, %v758
    %v760 = vsel %vm738, %v754, %v756
    %v761 = vsel %vm738, %v752, %v754
    %v762 = vsel %vm738, %v758, %v752
    %763 = vset.pattern.permute.xlu0 17
    %764 = vperm.xlu0 %763, %v337
    %v765 = vpop.permute.xlu0 %764
    %v767 = vmul.f32 %v765, %v761
    %v768 = vmul.f32 %v765, %v760
    %v769 = vmul.f32 %v765, %v759
    %v770 = vmul.f32 %v765, %v762
    %v771 = vadd.f32 %v747, %v767
    %v772 = vadd.f32 %v748, %v768
    %v773 = vadd.f32 %v749, %v769
    %v774 = vadd.f32 %v750, %v770
    %v775 = vmul.f32 %v141, %v771
    %v776 = vmul.f32 %v142, %v772
    %v777 = vmul.f32 %v143, %v773
    %v778 = vmul.f32 %v144, %v774
    %v779 = vadd.f32 %v726, %v775
    %v780 = vadd.f32 %v727, %v776
    %v781 = vadd.f32 %v728, %v777
    %v782 = vadd.f32 %v729, %v778
    %v783 = vmax.f32 %v779, 0.0
    %v784 = vmax.f32 %v780, 0.0
    %v785 = vmax.f32 %v781, 0.0
    %v786 = vmax.f32 %v782, 0.0
    %v787 = vmin.f32 %v783, 6.0
    %v788 = vmin.f32 %v784, 6.0
    %v789 = vmin.f32 %v785, 6.0
    %v790 = vmin.f32 %v786, 6.0
    %v791 = vld [vmem:[%s3] sm:$0xf]
    %vm792 = vcmask 64512
    %v794 = vsel %vm792, %v791, 0
    %796 = vmatprep.subr.mxu0 0.0
    %797 = vmatpush1.msra.mxu0 0.0
    %798 = vmatprep.subr.mxu0 0.0
    %799 = vmatpush1.msra.mxu0 0.0
    %800 = vmatprep.subr.mxu0 0.0
    %801 = vmatpush1.msra.mxu0 0.0
    %802 = vmatprep.subr.mxu0 0.0
    %803 = vmatpush1.msra.mxu0 0.0
    %804 = vmatprep.subr.mxu0 0.0
    %805 = vmatpush1.msra.mxu0 0.0
    %806 = vmatprep.subr.mxu0 0.0
    %807 = vmatpush1.msra.mxu0 0.0
    %808 = vmatprep.subr.mxu0 0.0
    %809 = vmatpush1.msra.mxu0 0.0
    %810 = vmatprep.subr.mxu0 0.0
    %811 = vmatpush1.msra.mxu0 0.0
    %812 = vmatprep.subr.mxu0 0.0
    %813 = vmatpush1.msra.mxu0 0.0
    %814 = vmatprep.subr.mxu0 0.0
    %815 = vmatpush1.msra.mxu0 0.0
    %816 = vmatprep.subr.mxu0 0.0
    %817 = vmatpush1.msra.mxu0 0.0
    %818 = vmatprep.subr.mxu0 0.0
    %819 = vmatpush1.msra.mxu0 0.0
    %820 = vmatprep.subr.mxu0 0.0
    %821 = vmatpush1.msra.mxu0 0.0
    %822 = vmatprep.subr.mxu0 0.0
    %823 = vmatpush1.msra.mxu0 0.0
    %824 = vmatprep.subr.mxu0 0.0
    %825 = vmatpush1.msra.mxu0 0.0
    %826 = vmatprep.subr.mxu0 %v788
    %827 = vmatpush1.msra.mxu0 %v787
    %828 = vmatprep.subr.mxu0 0.0
    %829 = vmatpush2.msra.mxu0 0.0
    %830 = vmatprep.subr.mxu0 0.0
    %831 = vmatpush2.msra.mxu0 0.0
    %832 = vmatprep.subr.mxu0 0.0
    %833 = vmatpush2.msra.mxu0 0.0
    %834 = vmatprep.subr.mxu0 0.0
    %835 = vmatpush2.msra.mxu0 0.0
    %836 = vmatprep.subr.mxu0 0.0
    %837 = vmatpush2.msra.mxu0 0.0
    %838 = vmatprep.subr.mxu0 0.0
    %839 = vmatpush2.msra.mxu0 0.0
    %840 = vmatprep.subr.mxu0 0.0
    %841 = vmatpush2.msra.mxu0 0.0
    %842 = vmatprep.subr.mxu0 0.0
    %843 = vmatpush2.msra.mxu0 0.0
    %844 = vmatprep.subr.mxu0 0.0
    %845 = vmatpush2.msra.mxu0 0.0
    %846 = vmatprep.subr.mxu0 0.0
    %847 = vmatpush2.msra.mxu0 0.0
    %848 = vmatprep.subr.mxu0 0.0
    %849 = vmatpush2.msra.mxu0 0.0
    %850 = vmatprep.subr.mxu0 0.0
    %851 = vmatpush2.msra.mxu0 0.0
    %852 = vmatprep.subr.mxu0 0.0
    %853 = vmatpush2.msra.mxu0 0.0
    %854 = vmatprep.subr.mxu0 0.0
    %855 = vmatpush2.msra.mxu0 0.0
    %856 = vmatprep.subr.mxu0 0.0
    %857 = vmatpush2.msra.mxu0 0.0
    %858 = vmatprep.subr.mxu0 0.0
    %859 = vmatpush2.msra.mxu0 0.0
    %860 = vmatprep.mubr.f32.mxu0 0.0
    %861 = vmatmul.mubr.f32.gmra.mxu0 %v794
    %v862 = vpop.f32.mrf.mxu0
    %v863 = vadd.f32 0.0, %v862
    %v864 = vpop.f32.mrf.mxu0
    %v865 = vadd.f32 0.0, %v864
    %866 = vdwg.mxu0
    %867 = vmatprep.subr.mxu0 0.0
    %868 = vmatpush1.msra.mxu0 0.0
    %869 = vmatprep.subr.mxu0 0.0
    %870 = vmatpush1.msra.mxu0 0.0
    %871 = vmatprep.subr.mxu0 0.0
    %872 = vmatpush1.msra.mxu0 0.0
    %873 = vmatprep.subr.mxu0 0.0
    %874 = vmatpush1.msra.mxu0 0.0
    %875 = vmatprep.subr.mxu0 0.0
    %876 = vmatpush1.msra.mxu0 0.0
    %877 = vmatprep.subr.mxu0 0.0
    %878 = vmatpush1.msra.mxu0 0.0
    %879 = vmatprep.subr.mxu0 0.0
    %880 = vmatpush1.msra.mxu0 0.0
    %881 = vmatprep.subr.mxu0 0.0
    %882 = vmatpush1.msra.mxu0 0.0
    %883 = vmatprep.subr.mxu0 0.0
    %884 = vmatpush1.msra.mxu0 0.0
    %885 = vmatprep.subr.mxu0 0.0
    %886 = vmatpush1.msra.mxu0 0.0
    %887 = vmatprep.subr.mxu0 0.0
    %888 = vmatpush1.msra.mxu0 0.0
    %889 = vmatprep.subr.mxu0 0.0
    %890 = vmatpush1.msra.mxu0 0.0
    %891 = vmatprep.subr.mxu0 0.0
    %892 = vmatpush1.msra.mxu0 0.0
    %893 = vmatprep.subr.mxu0 0.0
    %894 = vmatpush1.msra.mxu0 0.0
    %895 = vmatprep.subr.mxu0 0.0
    %896 = vmatpush1.msra.mxu0 0.0
    %897 = vmatprep.subr.mxu0 %v790
    %898 = vmatpush1.msra.mxu0 %v789
    %899 = vmatprep.subr.mxu0 0.0
    %900 = vmatpush2.msra.mxu0 0.0
    %901 = vmatprep.subr.mxu0 0.0
    %902 = vmatpush2.msra.mxu0 0.0
    %903 = vmatprep.subr.mxu0 0.0
    %904 = vmatpush2.msra.mxu0 0.0
    %905 = vmatprep.subr.mxu0 0.0
    %906 = vmatpush2.msra.mxu0 0.0
    %907 = vmatprep.subr.mxu0 0.0
    %908 = vmatpush2.msra.mxu0 0.0
    %909 = vmatprep.subr.mxu0 0.0
    %910 = vmatpush2.msra.mxu0 0.0
    %911 = vmatprep.subr.mxu0 0.0
    %912 = vmatpush2.msra.mxu0 0.0
    %913 = vmatprep.subr.mxu0 0.0
    %914 = vmatpush2.msra.mxu0 0.0
    %915 = vmatprep.subr.mxu0 0.0
    %916 = vmatpush2.msra.mxu0 0.0
    %917 = vmatprep.subr.mxu0 0.0
    %918 = vmatpush2.msra.mxu0 0.0
    %919 = vmatprep.subr.mxu0 0.0
    %920 = vmatpush2.msra.mxu0 0.0
    %921 = vmatprep.subr.mxu0 0.0
    %922 = vmatpush2.msra.mxu0 0.0
    %923 = vmatprep.subr.mxu0 0.0
    %924 = vmatpush2.msra.mxu0 0.0
    %925 = vmatprep.subr.mxu0 0.0
    %926 = vmatpush2.msra.mxu0 0.0
    %927 = vmatprep.subr.mxu0 0.0
    %928 = vmatpush2.msra.mxu0 0.0
    %929 = vmatprep.subr.mxu0 0.0
    %930 = vmatpush2.msra.mxu0 0.0
    %931 = vmatprep.mubr.f32.mxu0 0.0
    %932 = vmatmul.mubr.f32.gmra.mxu0 %v794
    %v933 = vpop.f32.mrf.mxu0
    %v934 = vadd.f32 0.0, %v933
    %v935 = vpop.f32.mrf.mxu0
    %v936 = vadd.f32 0.0, %v935
    %937 = vdwg.mxu0
    %v938 = vld [vmem:[#allocation2] sm:$0xf]
    %940 = vset.pattern.permute.xlu0 22
    %941 = vperm.xlu0 %940, %v938
    %v942 = vpop.permute.xlu0 %941
    %v944 = vmul.f32 %v942, %v863
    %v945 = vmul.f32 %v942, %v865
    %v946 = vmul.f32 %v942, %v934
    %v947 = vmul.f32 %v942, %v936
    %948 = vrot.lane.b32.xlu0 %v863, 34
    %v949 = vpop.permute.xlu0 %948
    %950 = vrot.lane.b32.xlu0 %v865, 34
    %v951 = vpop.permute.xlu0 %950
    %952 = vrot.lane.b32.xlu0 %v934, 34
    %v953 = vpop.permute.xlu0 %952
    %954 = vrot.lane.b32.xlu0 %v936, 34
    %v955 = vpop.permute.xlu0 %954
    %v956 = vsel %vm367, %v953, %v955
    %v957 = vsel %vm367, %v951, %v953
    %v958 = vsel %vm367, %v949, %v951
    %v959 = vsel %vm367, %v955, %v949
    %960 = vset.pattern.permute.xlu0 18
    %961 = vperm.xlu0 %960, %v938
    %v962 = vpop.permute.xlu0 %961
    %v964 = vmul.f32 %v962, %v959
    %v965 = vmul.f32 %v962, %v958
    %v966 = vmul.f32 %v962, %v957
    %v967 = vmul.f32 %v962, %v956
    %v968 = vmul.f32 %v65, %v964
    %v969 = vmul.f32 %v66, %v965
    %v970 = vmul.f32 %v67, %v966
    %v971 = vmul.f32 %v68, %v967
    %v972 = vadd.f32 %v944, %v968
    %v973 = vadd.f32 %v945, %v969
    %v974 = vadd.f32 %v946, %v970
    %v975 = vadd.f32 %v947, %v971
    %976 = vrot.lane.b32.xlu0 %v863, 32
    %v977 = vpop.permute.xlu0 %976
    %978 = vrot.lane.b32.xlu0 %v865, 32
    %v979 = vpop.permute.xlu0 %978
    %980 = vrot.lane.b32.xlu0 %v934, 32
    %v981 = vpop.permute.xlu0 %980
    %982 = vrot.lane.b32.xlu0 %v936, 32
    %v983 = vpop.permute.xlu0 %982
    %v984 = vsel %vm420, %v981, %v983
    %v985 = vsel %vm420, %v979, %v981
    %v986 = vsel %vm420, %v977, %v979
    %v987 = vsel %vm420, %v983, %v977
    %988 = vset.pattern.permute.xlu0 19
    %989 = vperm.xlu0 %988, %v938
    %v990 = vpop.permute.xlu0 %989
    %v992 = vmul.f32 %v990, %v987
    %v993 = vmul.f32 %v990, %v986
    %v994 = vmul.f32 %v990, %v985
    %v995 = vmul.f32 %v990, %v984
    %v996 = vmul.f32 %v73, %v992
    %v997 = vmul.f32 %v74, %v993
    %v998 = vmul.f32 %v75, %v994
    %v999 = vmul.f32 %v76, %v995
    %v1000 = vadd.f32 %v972, %v996
    %v1001 = vadd.f32 %v973, %v997
    %v1002 = vadd.f32 %v974, %v998
    %v1003 = vadd.f32 %v975, %v999
    %1004 = vrot.lane.b32.xlu0 %v863, 30
    %v1005 = vpop.permute.xlu0 %1004
    %1006 = vrot.lane.b32.xlu0 %v865, 30
    %v1007 = vpop.permute.xlu0 %1006
    %1008 = vrot.lane.b32.xlu0 %v934, 30
    %v1009 = vpop.permute.xlu0 %1008
    %1010 = vrot.lane.b32.xlu0 %v936, 30
    %v1011 = vpop.permute.xlu0 %1010
    %v1012 = vsel %vm473, %v1009, %v1011
    %v1013 = vsel %vm473, %v1007, %v1009
    %v1014 = vsel %vm473, %v1005, %v1007
    %v1015 = vsel %vm473, %v1011, %v1005
    %1016 = vset.pattern.permute.xlu0 20
    %1017 = vperm.xlu0 %1016, %v938
    %v1018 = vpop.permute.xlu0 %1017
    %v1020 = vmul.f32 %v1018, %v1015
    %v1021 = vmul.f32 %v1018, %v1014
    %v1022 = vmul.f32 %v1018, %v1013
    %v1023 = vmul.f32 %v1018, %v1012
    %v1024 = vmul.f32 %v89, %v1020
    %v1025 = vmul.f32 %v90, %v1021
    %v1026 = vmul.f32 %v91, %v1022
    %v1027 = vmul.f32 %v92, %v1023
    %v1028 = vadd.f32 %v1000, %v1024
    %v1029 = vadd.f32 %v1001, %v1025
    %v1030 = vadd.f32 %v1002, %v1026
    %v1031 = vadd.f32 %v1003, %v1027
    %1032 = vrot.lane.b32.xlu0 %v863, 2
    %v1033 = vpop.permute.xlu0 %1032
    %1034 = vrot.lane.b32.xlu0 %v865, 2
    %v1035 = vpop.permute.xlu0 %1034
    %1036 = vrot.lane.b32.xlu0 %v934, 2
    %v1037 = vpop.permute.xlu0 %1036
    %1038 = vrot.lane.b32.xlu0 %v936, 2
    %v1039 = vpop.permute.xlu0 %1038
    %v1040 = vsel %vm526, %v1037, %v1039
    %v1041 = vsel %vm526, %v1035, %v1037
    %v1042 = vsel %vm526, %v1033, %v1035
    %v1043 = vsel %vm526, %v1039, %v1033
    %1044 = vset.pattern.permute.xlu0 21
    %1045 = vperm.xlu0 %1044, %v938
    %v1046 = vpop.permute.xlu0 %1045
    %v1048 = vmul.f32 %v1046, %v1043
    %v1049 = vmul.f32 %v1046, %v1042
    %v1050 = vmul.f32 %v1046, %v1041
    %v1051 = vmul.f32 %v1046, %v1040
    %v1052 = vmul.f32 %v97, %v1048
    %v1053 = vmul.f32 %v98, %v1049
    %v1054 = vmul.f32 %v99, %v1050
    %v1055 = vmul.f32 %v100, %v1051
    %v1056 = vadd.f32 %v1028, %v1052
    %v1057 = vadd.f32 %v1029, %v1053
    %v1058 = vadd.f32 %v1030, %v1054
    %v1059 = vadd.f32 %v1031, %v1055
    %1060 = vrot.lane.b32.xlu0 %v863, 126
    %v1061 = vpop.permute.xlu0 %1060
    %1062 = vrot.lane.b32.xlu0 %v865, 126
    %v1063 = vpop.permute.xlu0 %1062
    %1064 = vrot.lane.b32.xlu0 %v934, 126
    %v1065 = vpop.permute.xlu0 %1064
    %1066 = vrot.lane.b32.xlu0 %v936, 126
    %v1067 = vpop.permute.xlu0 %1066
    %v1068 = vsel %vm579, %v1065, %v1067
    %v1069 = vsel %vm579, %v1063, %v1065
    %v1070 = vsel %vm579, %v1061, %v1063
    %v1071 = vsel %vm579, %v1067, %v1061
    %1072 = vset.pattern.permute.xlu0 23
    %1073 = vperm.xlu0 %1072, %v938
    %v1074 = vpop.permute.xlu0 %1073
    %v1076 = vmul.f32 %v1074, %v1070
    %v1077 = vmul.f32 %v1074, %v1069
    %v1078 = vmul.f32 %v1074, %v1068
    %v1079 = vmul.f32 %v1074, %v1071
    %v1080 = vmul.f32 %v105, %v1076
    %v1081 = vmul.f32 %v106, %v1077
    %v1082 = vmul.f32 %v107, %v1078
    %v1083 = vmul.f32 %v108, %v1079
    %v1084 = vadd.f32 %v1056, %v1080
    %v1085 = vadd.f32 %v1057, %v1081
    %v1086 = vadd.f32 %v1058, %v1082
    %v1087 = vadd.f32 %v1059, %v1083
    %1088 = vrot.lane.b32.xlu0 %v863, 98
    %v1089 = vpop.permute.xlu0 %1088
    %1090 = vrot.lane.b32.xlu0 %v865, 98
    %v1091 = vpop.permute.xlu0 %1090
    %1092 = vrot.lane.b32.xlu0 %v934, 98
    %v1093 = vpop.permute.xlu0 %1092
    %1094 = vrot.lane.b32.xlu0 %v936, 98
    %v1095 = vpop.permute.xlu0 %1094
    %v1096 = vsel %vm632, %v1093, %v1095
    %v1097 = vsel %vm632, %v1091, %v1093
    %v1098 = vsel %vm632, %v1089, %v1091
    %v1099 = vsel %vm632, %v1095, %v1089
    %1100 = vset.pattern.permute.xlu0 24
    %1101 = vperm.xlu0 %1100, %v938
    %v1102 = vpop.permute.xlu0 %1101
    %v1104 = vmul.f32 %v1102, %v1098
    %v1105 = vmul.f32 %v1102, %v1097
    %v1106 = vmul.f32 %v1102, %v1096
    %v1107 = vmul.f32 %v1102, %v1099
    %v1108 = vmul.f32 %v121, %v1104
    %v1109 = vmul.f32 %v122, %v1105
    %v1110 = vmul.f32 %v123, %v1106
    %v1111 = vmul.f32 %v124, %v1107
    %v1112 = vadd.f32 %v1084, %v1108
    %v1113 = vadd.f32 %v1085, %v1109
    %v1114 = vadd.f32 %v1086, %v1110
    %v1115 = vadd.f32 %v1087, %v1111
    %1116 = vrot.lane.b32.xlu0 %v863, 96
    %v1117 = vpop.permute.xlu0 %1116
    %1118 = vrot.lane.b32.xlu0 %v865, 96
    %v1119 = vpop.permute.xlu0 %1118
    %1120 = vrot.lane.b32.xlu0 %v934, 96
    %v1121 = vpop.permute.xlu0 %1120
    %1122 = vrot.lane.b32.xlu0 %v936, 96
    %v1123 = vpop.permute.xlu0 %1122
    %v1124 = vsel %vm685, %v1121, %v1123
    %v1125 = vsel %vm685, %v1119, %v1121
    %v1126 = vsel %vm685, %v1117, %v1119
    %v1127 = vsel %vm685, %v1123, %v1117
    %1128 = vset.pattern.permute.xlu0 25
    %1129 = vperm.xlu0 %1128, %v938
    %v1130 = vpop.permute.xlu0 %1129
    %v1132 = vmul.f32 %v1130, %v1126
    %v1133 = vmul.f32 %v1130, %v1125
    %v1134 = vmul.f32 %v1130, %v1124
    %v1135 = vmul.f32 %v1130, %v1127
    %v1136 = vmul.f32 %v129, %v1132
    %v1137 = vmul.f32 %v130, %v1133
    %v1138 = vmul.f32 %v131, %v1134
    %v1139 = vmul.f32 %v132, %v1135
    %v1140 = vadd.f32 %v1112, %v1136
    %v1141 = vadd.f32 %v1113, %v1137
    %v1142 = vadd.f32 %v1114, %v1138
    %v1143 = vadd.f32 %v1115, %v1139
    %1144 = vrot.lane.b32.xlu0 %v863, 94
    %v1145 = vpop.permute.xlu0 %1144
    %1146 = vrot.lane.b32.xlu0 %v865, 94
    %v1147 = vpop.permute.xlu0 %1146
    %1148 = vrot.lane.b32.xlu0 %v934, 94
    %v1149 = vpop.permute.xlu0 %1148
    %1150 = vrot.lane.b32.xlu0 %v936, 94
    %v1151 = vpop.permute.xlu0 %1150
    %v1152 = vsel %vm738, %v1149, %v1151
    %v1153 = vsel %vm738, %v1147, %v1149
    %v1154 = vsel %vm738, %v1145, %v1147
    %v1155 = vsel %vm738, %v1151, %v1145
    %1156 = vset.pattern.permute.xlu0 26
    %1157 = vperm.xlu0 %1156, %v938
    %v1158 = vpop.permute.xlu0 %1157
    %v1160 = vmul.f32 %v1158, %v1154
    %v1161 = vmul.f32 %v1158, %v1153
    %v1162 = vmul.f32 %v1158, %v1152
    %v1163 = vmul.f32 %v1158, %v1155
    %v1164 = vmul.f32 %v141, %v1160
    %v1165 = vmul.f32 %v142, %v1161
    %v1166 = vmul.f32 %v143, %v1162
    %v1167 = vmul.f32 %v144, %v1163
    %v1168 = vadd.f32 %v1140, %v1164
    %v1169 = vadd.f32 %v1141, %v1165
    %v1170 = vadd.f32 %v1142, %v1166
    %v1171 = vadd.f32 %v1143, %v1167
    %v1172 = vmax.f32 %v1168, 0.0
    %v1173 = vmax.f32 %v1169, 0.0
    %v1174 = vmax.f32 %v1170, 0.0
    %v1175 = vmax.f32 %v1171, 0.0
    %v1176 = vmin.f32 %v1172, 6.0
    %v1177 = vmin.f32 %v1173, 6.0
    %v1178 = vmin.f32 %v1174, 6.0
    %v1179 = vmin.f32 %v1175, 6.0
    %1180 = vrot.lane.b32.xlu0 %v791, 120
    %v1181 = vpop.permute.xlu0 %1180
    %v1184 = vsel %vm151, %v1181, 0
    %v1187 = vsel %vm158, %v1176, 0
    %v1190 = vsel %vm158, %v1177, 0
    %v1193 = vsel %vm158, %v1178, 0
    %v1196 = vsel %vm158, %v1179, 0
    %1198 = vmatprep.subr.mxu0 0.0
    %1199 = vmatpush1.msra.mxu0 0.0
    %1200 = vmatprep.subr.mxu0 0.0
    %1201 = vmatpush1.msra.mxu0 0.0
    %1202 = vmatprep.subr.mxu0 0.0
    %1203 = vmatpush1.msra.mxu0 0.0
    %1204 = vmatprep.subr.mxu0 0.0
    %1205 = vmatpush1.msra.mxu0 0.0
    %1206 = vmatprep.subr.mxu0 0.0
    %1207 = vmatpush1.msra.mxu0 0.0
    %1208 = vmatprep.subr.mxu0 0.0
    %1209 = vmatpush1.msra.mxu0 0.0
    %1210 = vmatprep.subr.mxu0 0.0
    %1211 = vmatpush1.msra.mxu0 0.0
    %1212 = vmatprep.subr.mxu0 0.0
    %1213 = vmatpush1.msra.mxu0 0.0
    %1214 = vmatprep.subr.mxu0 0.0
    %1215 = vmatpush1.msra.mxu0 0.0
    %1216 = vmatprep.subr.mxu0 0.0
    %1217 = vmatpush1.msra.mxu0 0.0
    %1218 = vmatprep.subr.mxu0 0.0
    %1219 = vmatpush1.msra.mxu0 0.0
    %1220 = vmatprep.subr.mxu0 0.0
    %1221 = vmatpush1.msra.mxu0 0.0
    %1222 = vmatprep.subr.mxu0 0.0
    %1223 = vmatpush1.msra.mxu0 0.0
    %1224 = vmatprep.subr.mxu0 0.0
    %1225 = vmatpush1.msra.mxu0 0.0
    %1226 = vmatprep.subr.mxu0 0.0
    %1227 = vmatpush1.msra.mxu0 0.0
    %1228 = vmatprep.subr.mxu0 %v1190
    %1229 = vmatpush1.msra.mxu0 %v1187
    %1230 = vmatprep.subr.mxu0 0.0
    %1231 = vmatpush2.msra.mxu0 0.0
    %1232 = vmatprep.subr.mxu0 0.0
    %1233 = vmatpush2.msra.mxu0 0.0
    %1234 = vmatprep.subr.mxu0 0.0
    %1235 = vmatpush2.msra.mxu0 0.0
    %1236 = vmatprep.subr.mxu0 0.0
    %1237 = vmatpush2.msra.mxu0 0.0
    %1238 = vmatprep.subr.mxu0 0.0
    %1239 = vmatpush2.msra.mxu0 0.0
    %1240 = vmatprep.subr.mxu0 0.0
    %1241 = vmatpush2.msra.mxu0 0.0
    %1242 = vmatprep.subr.mxu0 0.0
    %1243 = vmatpush2.msra.mxu0 0.0
    %1244 = vmatprep.subr.mxu0 0.0
    %1245 = vmatpush2.msra.mxu0 0.0
    %1246 = vmatprep.subr.mxu0 0.0
    %1247 = vmatpush2.msra.mxu0 0.0
    %1248 = vmatprep.subr.mxu0 0.0
    %1249 = vmatpush2.msra.mxu0 0.0
    %1250 = vmatprep.subr.mxu0 0.0
    %1251 = vmatpush2.msra.mxu0 0.0
    %1252 = vmatprep.subr.mxu0 0.0
    %1253 = vmatpush2.msra.mxu0 0.0
    %1254 = vmatprep.subr.mxu0 0.0
    %1255 = vmatpush2.msra.mxu0 0.0
    %1256 = vmatprep.subr.mxu0 0.0
    %1257 = vmatpush2.msra.mxu0 0.0
    %1258 = vmatprep.subr.mxu0 0.0
    %1259 = vmatpush2.msra.mxu0 0.0
    %1260 = vmatprep.subr.mxu0 0.0
    %1261 = vmatpush2.msra.mxu0 0.0
    %1262 = vmatprep.mubr.f32.mxu0 0.0
    %1263 = vmatmul.mubr.f32.gmra.mxu0 %v1184
    %v1264 = vpop.f32.mrf.mxu0
    %v1265 = vadd.f32 %v30, %v1264
    %v1266 = vpop.f32.mrf.mxu0
    %v1267 = vadd.f32 %v149, %v1266
    %1268 = vdwg.mxu0
    %1269 = vmatprep.subr.mxu0 0.0
    %1270 = vmatpush1.msra.mxu0 0.0
    %1271 = vmatprep.subr.mxu0 0.0
    %1272 = vmatpush1.msra.mxu0 0.0
    %1273 = vmatprep.subr.mxu0 0.0
    %1274 = vmatpush1.msra.mxu0 0.0
    %1275 = vmatprep.subr.mxu0 0.0
    %1276 = vmatpush1.msra.mxu0 0.0
    %1277 = vmatprep.subr.mxu0 0.0
    %1278 = vmatpush1.msra.mxu0 0.0
    %1279 = vmatprep.subr.mxu0 0.0
    %1280 = vmatpush1.msra.mxu0 0.0
    %1281 = vmatprep.subr.mxu0 0.0
    %1282 = vmatpush1.msra.mxu0 0.0
    %1283 = vmatprep.subr.mxu0 0.0
    %1284 = vmatpush1.msra.mxu0 0.0
    %1285 = vmatprep.subr.mxu0 0.0
    %1286 = vmatpush1.msra.mxu0 0.0
    %1287 = vmatprep.subr.mxu0 0.0
    %1288 = vmatpush1.msra.mxu0 0.0
    %1289 = vmatprep.subr.mxu0 0.0
    %1290 = vmatpush1.msra.mxu0 0.0
    %1291 = vmatprep.subr.mxu0 0.0
    %1292 = vmatpush1.msra.mxu0 0.0
    %1293 = vmatprep.subr.mxu0 0.0
    %1294 = vmatpush1.msra.mxu0 0.0
    %1295 = vmatprep.subr.mxu0 0.0
    %1296 = vmatpush1.msra.mxu0 0.0
    %1297 = vmatprep.subr.mxu0 0.0
    %1298 = vmatpush1.msra.mxu0 0.0
    %1299 = vmatprep.subr.mxu0 %v1196
    %1300 = vmatpush1.msra.mxu0 %v1193
    %1301 = vmatprep.subr.mxu0 0.0
    %1302 = vmatpush2.msra.mxu0 0.0
    %1303 = vmatprep.subr.mxu0 0.0
    %1304 = vmatpush2.msra.mxu0 0.0
    %1305 = vmatprep.subr.mxu0 0.0
    %1306 = vmatpush2.msra.mxu0 0.0
    %1307 = vmatprep.subr.mxu0 0.0
    %1308 = vmatpush2.msra.mxu0 0.0
    %1309 = vmatprep.subr.mxu0 0.0
    %1310 = vmatpush2.msra.mxu0 0.0
    %1311 = vmatprep.subr.mxu0 0.0
    %1312 = vmatpush2.msra.mxu0 0.0
    %1313 = vmatprep.subr.mxu0 0.0
    %1314 = vmatpush2.msra.mxu0 0.0
    %1315 = vmatprep.subr.mxu0 0.0
    %1316 = vmatpush2.msra.mxu0 0.0
    %1317 = vmatprep.subr.mxu0 0.0
    %1318 = vmatpush2.msra.mxu0 0.0
    %1319 = vmatprep.subr.mxu0 0.0
    %1320 = vmatpush2.msra.mxu0 0.0
    %1321 = vmatprep.subr.mxu0 0.0
    %1322 = vmatpush2.msra.mxu0 0.0
    %1323 = vmatprep.subr.mxu0 0.0
    %1324 = vmatpush2.msra.mxu0 0.0
    %1325 = vmatprep.subr.mxu0 0.0
    %1326 = vmatpush2.msra.mxu0 0.0
    %1327 = vmatprep.subr.mxu0 0.0
    %1328 = vmatpush2.msra.mxu0 0.0
    %1329 = vmatprep.subr.mxu0 0.0
    %1330 = vmatpush2.msra.mxu0 0.0
    %1331 = vmatprep.subr.mxu0 0.0
    %1332 = vmatpush2.msra.mxu0 0.0
    %1333 = vmatprep.mubr.f32.mxu0 0.0
    %1334 = vmatmul.mubr.f32.gmra.mxu0 %v1184
    %v1335 = vpop.f32.mrf.mxu0
    %v1336 = vadd.f32 %v31, %v1335
    %v1337 = vpop.f32.mrf.mxu0
    %v1338 = vadd.f32 %v150, %v1337
    %1339 = vdwg.mxu0
    %v1344 = vcombine.low %v1265, %v1267
    %v1345 = vcombine.low %v1336, %v1338
    %1348 = vst [vmem:[#allocation5] sm:$0xff] %v1344
    %1349 = vst [vmem:[#allocation5 + $0x8] sm:$0xff] %v1345
    // Predicated region
    $region22: #{tpu_custom_call.1} parent=1 // pred_check
      _
    $region23: #{tpu_custom_call.1} parent=1 // pred_check_branch
      %1351 = sbr.rel (0) target = $region25
    $region24: #{tpu_custom_call.1} parent=1 // pred_region
      %s1353 = ssub.s32 256, 256
      %1354 = vsyncadd [#allocation4], %s1353
      %s1356 = sshll.u32 [#allocation5], 4
      %s1357 = int_to_ptr.vmem [resolvable:$true] %s1356
      %1359 = dma.vmem_to_hbm [thread:$0]  %s1357, 256, %s4, [#allocation4]
    $region25: #{tpu_custom_call.1} parent=1 // pred_fallthru
      _
    // Predicated region
    $region26: #{tpu_custom_call.1} parent=1 // pred_check
      _
    $region27: #{tpu_custom_call.1} parent=1 // pred_check_branch
      %1361 = sbr.rel (0) target = $region29
    $region28: #{tpu_custom_call.1} parent=1 // pred_region
      %1362 = dma.done [#allocation4], 256
    $region29: #{tpu_custom_call.1} parent=1 // pred_fallthru
      _
    %1363 = vsyncpa [#allocation3], 1
    %1364 = vsyncpa [#allocation4], 1

</llo_original>
